<compile_context>
chip_gen: v6e
topology: v6e:2x2x1
jax: 0.10.0
libtpu: 0.0.40
codegen_flags: <defaults>
</compile_context>

<pallas_src>
import functools
import math

import jax
import jax.numpy as jnp
from jax.experimental import pallas as pl
from jax.experimental.pallas import tpu as pltpu


# ---------------------------------------------------------------------------
# In-kernel helpers
# ---------------------------------------------------------------------------

def _mm(a, b):
    """MXU matmul: bf16 operands (weights already bf16), f32 accumulation."""
    return jnp.dot(a.astype(jnp.bfloat16), b, preferred_element_type=jnp.float32)


def _layernorm(x, g, b, eps=1e-12):
    mu = jnp.mean(x, axis=-1, keepdims=True)
    var = jnp.mean((x - mu) ** 2, axis=-1, keepdims=True)
    return (x - mu) * jax.lax.rsqrt(var + eps) * g + b


# ---------------------------------------------------------------------------
# Pallas kernels
# ---------------------------------------------------------------------------

def _encoder_stack_kernel(x_ref, mask_ref, embg_ref, embb_ref,
                          wqkv_ref, bqkv_ref, wo_ref, bo_ref,
                          ln1g_ref, ln1b_ref, w1_ref, b1_ref,
                          w2_ref, b2_ref, ln2g_ref, ln2b_ref,
                          cls_ref, resid_ref, ctx_ref, *, heads):
    """grid = (batch, layer). Residual stream resident in VMEM across layers."""
    l = pl.program_id(1)

    # Layer 0: embeddings LayerNorm seeds the VMEM-resident residual stream.
    @pl.when(l == 0)
    def _():
        resid_ref[...] = _layernorm(x_ref[0].astype(jnp.float32),
                                    embg_ref[...], embb_ref[...])

    x = resid_ref[...]                                   # (S, H) f32
    S, H = x.shape
    Dh = H // heads

    # ---- fused QKV projection (1/sqrt(Dh) folded into the Q columns) ----
    qkv = _mm(x, wqkv_ref[0]) + bqkv_ref[0]              # (S, 3H) f32
    bias = mask_ref[0]                                   # (1, S) additive mask

    # ---- per-head attention, written straight into the VMEM ctx scratch ----
    # (no concatenates; heads are static column slabs of the scratch buffer)
    # TODO(synk): at bert-base scale, pack head pairs (2 x Dh=64) into
    #             128-lane-aligned slabs to avoid masked column stores.
    for h in range(heads):
        c0 = h * Dh
        q = qkv[:, c0:c0 + Dh].astype(jnp.bfloat16)
        k = qkv[:, H + c0:H + c0 + Dh].astype(jnp.bfloat16)
        v = qkv[:, 2 * H + c0:2 * H + c0 + Dh].astype(jnp.bfloat16)
        s = jnp.einsum("qd,kd->qk", q, k,
                       preferred_element_type=jnp.float32) + bias
        s = s - jnp.max(s, axis=-1, keepdims=True)
        p = jnp.exp(s)
        p = p * pl.reciprocal(jnp.sum(p, axis=-1, keepdims=True), approx=True)
        ctx_ref[:, c0:c0 + Dh] = jnp.dot(
            p.astype(jnp.bfloat16), v,
            preferred_element_type=jnp.float32).astype(ctx_ref.dtype)

    # ---- attention output projection + residual LayerNorm (f32 stats) ----
    attn = _mm(ctx_ref[...], wo_ref[0]) + bo_ref[0]
    x1 = _layernorm(attn + x, ln1g_ref[0], ln1b_ref[0])

    # ---- GELU FFN (tanh form -> EUP) + residual LayerNorm ----
    hmid = jax.nn.gelu(_mm(x1, w1_ref[0]) + b1_ref[0], approximate=True)
    y = _mm(hmid, w2_ref[0]) + b2_ref[0]
    new_x = _layernorm(y + x1, ln2g_ref[0], ln2b_ref[0])
    resid_ref[...] = new_x

    # ---- last layer: emit only the [CLS] row for this batch element ----
    @pl.when(l == pl.num_programs(1) - 1)
    def _():
        cls_ref[...] = new_x[0:1, :][None, :, :]         # (1, 1, H)


def _head_kernel(cls_ref, pw_ref, pb_ref, ow_ref, ob_ref, o_ref):
    """Fused pooler(tanh) + dropout(identity, eval) + classifier (lane-padded)."""
    pooled = jnp.tanh(_mm(cls_ref[...].astype(jnp.float32), pw_ref[...])
                      + pb_ref[...])
    # nn.Dropout(p=0.3) is identity in eval mode.
    # TODO(synk): training-mode dropout via pltpu.prng_seed / prng_random_bits.
    o_ref[...] = _mm(pooled, ow_ref[...]) + ob_ref[...]


# ---------------------------------------------------------------------------
# pallas_call wrappers
# ---------------------------------------------------------------------------

def pallas_encoder_stack(x_emb, mask_bias, p, *, heads, layers):
    B, S, H = x_emb.shape
    I = p["w1"].shape[-1]

    per_batch = lambda shape: pl.BlockSpec((1,) + shape, lambda b, l: (b, 0, 0))
    per_layer = lambda shape: pl.BlockSpec((1,) + shape, lambda b, l: (l, 0, 0))
    shared2d = lambda shape: pl.BlockSpec(shape, lambda b, l: (0, 0))

    kern = functools.partial(_encoder_stack_kernel, heads=heads)
    return pl.pallas_call(
        kern,
        out_shape=jax.ShapeDtypeStruct((B, 1, H), jnp.float32),
        grid=(B, layers),
        in_specs=[
            per_batch((S, H)),                       # embeddings (bf16)
            per_batch((1, S)),                       # additive mask bias (f32)
            shared2d((1, H)), shared2d((1, H)),      # embedding LN gamma/beta
            per_layer((H, 3 * H)), per_layer((1, 3 * H)),   # fused QKV
            per_layer((H, H)), per_layer((1, H)),           # attn out proj
            per_layer((1, H)), per_layer((1, H)),           # LN1
            per_layer((H, I)), per_layer((1, I)),           # FFN up
            per_layer((I, H)), per_layer((1, H)),           # FFN down
            per_layer((1, H)), per_layer((1, H)),           # LN2
        ],
        out_specs=pl.BlockSpec((1, 1, H), lambda b, l: (b, 0, 0)),
        scratch_shapes=[pltpu.VMEM((S, H), jnp.float32),    # residual stream
                        pltpu.VMEM((S, H), jnp.bfloat16)],  # attention context
        compiler_params=pltpu.CompilerParams(
            dimension_semantics=("parallel", "arbitrary"),
            vmem_limit_bytes=64 * 1024 * 1024),
    )(x_emb, mask_bias, p["emb_ln_g"], p["emb_ln_b"],
      p["wqkv"], p["bqkv"], p["wo"], p["bo"], p["ln1_g"], p["ln1_b"],
      p["w1"], p["b1"], p["w2"], p["b2"], p["ln2_g"], p["ln2_b"])


def pallas_pooler_head(cls, pool_w, pool_b, out_w_pad, out_b_pad):
    B, H = cls.shape
    NP = out_w_pad.shape[1]
    return pl.pallas_call(
        _head_kernel,
        out_shape=jax.ShapeDtypeStruct((B, NP), jnp.float32),
        grid=(1,),
        in_specs=[pl.BlockSpec((B, H), lambda i: (0, 0)),
                  pl.BlockSpec((H, H), lambda i: (0, 0)),
                  pl.BlockSpec((1, H), lambda i: (0, 0)),
                  pl.BlockSpec((H, NP), lambda i: (0, 0)),
                  pl.BlockSpec((1, NP), lambda i: (0, 0))],
        out_specs=pl.BlockSpec((B, NP), lambda i: (0, 0)),
    )(cls, pool_w, pool_b, out_w_pad, out_b_pad)


# ---------------------------------------------------------------------------
# Tiny deterministic BERT + classifier head
# ---------------------------------------------------------------------------

CFG = dict(
    vocab=100, hidden=32, layers=2, heads=2, inter=64,
    max_pos=16, type_vocab=2, n_classes=6,
)
_LANE = 128


def init_params(key):
    cfg = CFG
    H, I, L, C = cfg["hidden"], cfg["inter"], cfg["layers"], cfg["n_classes"]
    Dh = H // cfg["heads"]
    scale = 1.0 / math.sqrt(Dh)
    c_pad = _LANE * ((C + _LANE - 1) // _LANE)

    def nrm(k, shape):
        return 0.02 * jax.random.normal(k, shape, dtype=jnp.float32)

    keys = iter(jax.random.split(key, 16))
    out_w = nrm(next(keys), (H, C))

    # fused per-layer QKV weights, stacked over layers; fold the 1/sqrt(Dh)
    # attention scale into the Q slice (weight + bias) so the kernel never
    # multiplies the SxS score matrix by it.
    wqkv = nrm(next(keys), (L, H, 3 * H))
    wqkv = wqkv.at[:, :, :H].multiply(scale)
    bqkv = jnp.zeros((L, 1, 3 * H), jnp.float32)
    bqkv = bqkv.at[:, :, :H].multiply(scale)

    return dict(
        word_emb=nrm(next(keys), (cfg["vocab"], H)),
        pos_emb=nrm(next(keys), (cfg["max_pos"], H)),
        type_emb=nrm(next(keys), (cfg["type_vocab"], H)),
        emb_ln_g=jnp.ones((1, H), jnp.float32),
        emb_ln_b=jnp.zeros((1, H), jnp.float32),
        # stacked per-layer encoder weights (big matrices in bf16)
        wqkv=wqkv.astype(jnp.bfloat16),
        bqkv=bqkv,
        wo=nrm(next(keys), (L, H, H)).astype(jnp.bfloat16),
        bo=jnp.zeros((L, 1, H), jnp.float32),
        ln1_g=jnp.ones((L, 1, H), jnp.float32),
        ln1_b=jnp.zeros((L, 1, H), jnp.float32),
        w1=nrm(next(keys), (L, H, I)).astype(jnp.bfloat16),
        b1=jnp.zeros((L, 1, I), jnp.float32),
        w2=nrm(next(keys), (L, I, H)).astype(jnp.bfloat16),
        b2=jnp.zeros((L, 1, H), jnp.float32),
        ln2_g=jnp.ones((L, 1, H), jnp.float32),
        ln2_b=jnp.zeros((L, 1, H), jnp.float32),
        # pooler + classifier (classifier zero-padded to a lane-dense slab)
        pool_w=nrm(next(keys), (H, H)).astype(jnp.bfloat16),
        pool_b=jnp.zeros((1, H), jnp.float32),
        out_w_pad=jnp.pad(out_w, ((0, 0), (0, c_pad - C))).astype(jnp.bfloat16),
        out_b_pad=jnp.zeros((1, c_pad), jnp.float32),
    )


def emotion_classifier_forward(params, input_ids, attention_mask):
    cfg = CFG
    B, S = input_ids.shape
    H = cfg["hidden"]

    # --- embeddings (table gather is XLA glue); bf16 handoff into the kernel ---
    # TODO(synk): token_type_ids are assumed all-zero (type_emb[0]).
    emb = (params["word_emb"][input_ids]
           + params["pos_emb"][:S][None, :, :]
           + params["type_emb"][0][None, None, :])            # (B, S, H) f32
    x_emb = emb.astype(jnp.bfloat16)

    # additive attention-mask bias, (B, 1, S)
    mask_bias = ((1.0 - attention_mask.astype(jnp.float32)) * -1e9)[:, None, :]

    # --- full encoder stack (embedding LN + all layers) in ONE pallas_call ---
    cls = pallas_encoder_stack(x_emb, mask_bias, params,
                               heads=cfg["heads"], layers=cfg["layers"])
    cls = cls.reshape(B, H)                                    # (B, 1, H) -> (B, H)

    # --- pooler(tanh over [CLS]) + dropout(identity) + classifier, fused ---
    logits_pad = pallas_pooler_head(cls, params["pool_w"], params["pool_b"],
                                    params["out_w_pad"], params["out_b_pad"])
    return logits_pad[:, :cfg["n_classes"]]                    # (B, n_classes)


if __name__ == "__main__":
    key = jax.random.PRNGKey(0)
    pk, ik = jax.random.split(key)

    params = init_params(pk)

    B, S = 2, 8
    input_ids = jax.random.randint(ik, (B, S), 0, CFG["vocab"], dtype=jnp.int32)
    attention_mask = jnp.array(
        [[1, 1, 1, 1, 1, 1, 1, 1],
         [1, 1, 1, 1, 1, 1, 0, 0]], dtype=jnp.int32)

    fwd = jax.jit(functools.partial(emotion_classifier_forward, params))
    logits = fwd(input_ids, attention_mask)
    jax.block_until_ready(logits)
    assert logits.shape == (B, CFG["n_classes"])
    assert bool(jnp.all(jnp.isfinite(logits)))
    print("KERNEL_OK")
</pallas_src>

<mosaic_0001>
module attributes {stable_mosaic.version = 11 : i64} {
  func.func @_head_kernel(%arg0: i32, %arg1: memref<2x32xf32, #tpu.memory_space<vmem>>, %arg2: memref<32x32xbf16, #tpu.memory_space<vmem>>, %arg3: memref<1x32xf32, #tpu.memory_space<vmem>>, %arg4: memref<32x128xbf16, #tpu.memory_space<vmem>>, %arg5: memref<1x128xf32, #tpu.memory_space<vmem>>, %arg6: memref<2x128xf32, #tpu.memory_space<vmem>>) attributes {dimension_semantics = [#tpu.dimension_semantics<arbitrary>], iteration_bounds = array<i64: 1>, scalar_prefetch = 0 : i64, scratch_operands = 0 : i64, tpu.core_type = #tpu.core_type<tc>, window_params = [{pipeline_mode = #tpu.pipeline_mode<synchronous>, transform_indices = @transform_0, window_bounds = array<i64: 2, 32>}, {pipeline_mode = #tpu.pipeline_mode<synchronous>, transform_indices = @transform_1, window_bounds = array<i64: 32, 32>}, {pipeline_mode = #tpu.pipeline_mode<synchronous>, transform_indices = @transform_2, window_bounds = array<i64: 1, 32>}, {pipeline_mode = #tpu.pipeline_mode<synchronous>, transform_indices = @transform_3, window_bounds = array<i64: 32, 128>}, {pipeline_mode = #tpu.pipeline_mode<synchronous>, transform_indices = @transform_4, window_bounds = array<i64: 1, 128>}, {pipeline_mode = #tpu.pipeline_mode<synchronous>, transform_indices = @transform_5, window_bounds = array<i64: 2, 128>}]} {
    %c0 = arith.constant 0 : index
    %c0_0 = arith.constant 0 : index
    %0 = vector.load %arg1[%c0, %c0_0] : memref<2x32xf32, #tpu.memory_space<vmem>>, vector<2x32xf32>
    %c0_1 = arith.constant 0 : index
    %c0_2 = arith.constant 0 : index
    %1 = vector.load %arg2[%c0_1, %c0_2] : memref<32x32xbf16, #tpu.memory_space<vmem>>, vector<32x32xbf16>
    %2 = arith.truncf %0 : vector<2x32xf32> to vector<2x32xbf16>
    %cst = arith.constant dense<0.000000e+00> : vector<2x32xf32>
    %3 = tpu.matmul %2, %1, %cst {dimension_numbers = #tpu.dot_dimension_numbers<[1], [0], [0], [1], [0, 0, 1, 1], [], []>} : vector<2x32xbf16>, vector<32x32xbf16>, vector<2x32xf32> -> vector<2x32xf32>
    %c0_3 = arith.constant 0 : index
    %c0_4 = arith.constant 0 : index
    %4 = vector.load %arg3[%c0_3, %c0_4] : memref<1x32xf32, #tpu.memory_space<vmem>>, vector<1x32xf32>
    %5 = vector.broadcast %4 : vector<1x32xf32> to vector<2x32xf32>
    %6 = arith.addf %3, %5 : vector<2x32xf32>
    %7 = math.tanh %6 : vector<2x32xf32>
    %c0_5 = arith.constant 0 : index
    %c0_6 = arith.constant 0 : index
    %8 = vector.load %arg4[%c0_5, %c0_6] : memref<32x128xbf16, #tpu.memory_space<vmem>>, vector<32x128xbf16>
    %9 = arith.truncf %7 : vector<2x32xf32> to vector<2x32xbf16>
    %cst_7 = arith.constant dense<0.000000e+00> : vector<2x128xf32>
    %10 = tpu.matmul %9, %8, %cst_7 {dimension_numbers = #tpu.dot_dimension_numbers<[1], [0], [0], [1], [0, 0, 1, 1], [], []>} : vector<2x32xbf16>, vector<32x128xbf16>, vector<2x128xf32> -> vector<2x128xf32>
    %c0_8 = arith.constant 0 : index
    %c0_9 = arith.constant 0 : index
    %11 = vector.load %arg5[%c0_8, %c0_9] : memref<1x128xf32, #tpu.memory_space<vmem>>, vector<1x128xf32>
    %12 = vector.broadcast %11 : vector<1x128xf32> to vector<2x128xf32>
    %13 = arith.addf %10, %12 : vector<2x128xf32>
    %c0_10 = arith.constant 0 : index
    %c0_11 = arith.constant 0 : index
    %14 = vector.load %arg6[%c0_10, %c0_11] : memref<2x128xf32, #tpu.memory_space<vmem>>, vector<2x128xf32>
    tpu.vector_store %arg6[%c0_10, %c0_11], %13 {strides = array<i32>} : memref<2x128xf32, #tpu.memory_space<vmem>>, vector<2x128xf32>,
    return
  }
  func.func @transform_0(%arg0: i32) -> (i32, i32) {
    %c0_i32 = arith.constant 0 : i32
    %c0_i32_0 = arith.constant 0 : i32
    %c0_i32_1 = arith.constant 0 : i32
    return %c0_i32, %c0_i32_0 : i32, i32
  }
  func.func @transform_1(%arg0: i32) -> (i32, i32) {
    %c0_i32 = arith.constant 0 : i32
    %c0_i32_0 = arith.constant 0 : i32
    %c0_i32_1 = arith.constant 0 : i32
    return %c0_i32, %c0_i32_0 : i32, i32
  }
  func.func @transform_2(%arg0: i32) -> (i32, i32) {
    %c0_i32 = arith.constant 0 : i32
    %c0_i32_0 = arith.constant 0 : i32
    %c0_i32_1 = arith.constant 0 : i32
    return %c0_i32, %c0_i32_0 : i32, i32
  }
  func.func @transform_3(%arg0: i32) -> (i32, i32) {
    %c0_i32 = arith.constant 0 : i32
    %c0_i32_0 = arith.constant 0 : i32
    %c0_i32_1 = arith.constant 0 : i32
    return %c0_i32, %c0_i32_0 : i32, i32
  }
  func.func @transform_4(%arg0: i32) -> (i32, i32) {
    %c0_i32 = arith.constant 0 : i32
    %c0_i32_0 = arith.constant 0 : i32
    %c0_i32_1 = arith.constant 0 : i32
    return %c0_i32, %c0_i32_0 : i32, i32
  }
  func.func @transform_5(%arg0: i32) -> (i32, i32) {
    %c0_i32 = arith.constant 0 : i32
    %c0_i32_0 = arith.constant 0 : i32
    %c0_i32_1 = arith.constant 0 : i32
    return %c0_i32, %c0_i32_0 : i32, i32
  }
}

module attributes {stable_mosaic.version = 11 : i64} {
  func.func @_encoder_stack_kernel(%arg0: i32, %arg1: i32, %arg2: memref<1x8x32xbf16, #tpu.memory_space<vmem>>, %arg3: memref<1x1x8xf32, #tpu.memory_space<vmem>>, %arg4: memref<1x32xf32, #tpu.memory_space<vmem>>, %arg5: memref<1x32xf32, #tpu.memory_space<vmem>>, %arg6: memref<1x32x96xbf16, #tpu.memory_space<vmem>>, %arg7: memref<1x1x96xf32, #tpu.memory_space<vmem>>, %arg8: memref<1x32x32xbf16, #tpu.memory_space<vmem>>, %arg9: memref<1x1x32xf32, #tpu.memory_space<vmem>>, %arg10: memref<1x1x32xf32, #tpu.memory_space<vmem>>, %arg11: memref<1x1x32xf32, #tpu.memory_space<vmem>>, %arg12: memref<1x32x64xbf16, #tpu.memory_space<vmem>>, %arg13: memref<1x1x64xf32, #tpu.memory_space<vmem>>, %arg14: memref<1x64x32xbf16, #tpu.memory_space<vmem>>, %arg15: memref<1x1x32xf32, #tpu.memory_space<vmem>>, %arg16: memref<1x1x32xf32, #tpu.memory_space<vmem>>, %arg17: memref<1x1x32xf32, #tpu.memory_space<vmem>>, %arg18: memref<1x1x32xf32, #tpu.memory_space<vmem>>, %arg19: memref<8x32xf32, #tpu.memory_space<vmem>>, %arg20: memref<8x32xbf16, #tpu.memory_space<vmem>>) attributes {dimension_semantics = [#tpu.dimension_semantics<parallel>, #tpu.dimension_semantics<arbitrary>], iteration_bounds = array<i64: 2, 2>, scalar_prefetch = 0 : i64, scratch_operands = 2 : i64, tpu.core_type = #tpu.core_type<tc>, window_params = [{transform_indices = @transform_0, window_bounds = array<i64: 1, 8, 32>}, {transform_indices = @transform_1, window_bounds = array<i64: 1, 1, 8>}, {pipeline_mode = #tpu.pipeline_mode<synchronous>, transform_indices = @transform_2, window_bounds = array<i64: 1, 32>}, {pipeline_mode = #tpu.pipeline_mode<synchronous>, transform_indices = @transform_3, window_bounds = array<i64: 1, 32>}, {transform_indices = @transform_4, window_bounds = array<i64: 1, 32, 96>}, {transform_indices = @transform_5, window_bounds = array<i64: 1, 1, 96>}, {transform_indices = @transform_6, window_bounds = array<i64: 1, 32, 32>}, {transform_indices = @transform_7, window_bounds = array<i64: 1, 1, 32>}, {transform_indices = @transform_8, window_bounds = array<i64: 1, 1, 32>}, {transform_indices = @transform_9, window_bounds = array<i64: 1, 1, 32>}, {transform_indices = @transform_10, window_bounds = array<i64: 1, 32, 64>}, {transform_indices = @transform_11, window_bounds = array<i64: 1, 1, 64>}, {transform_indices = @transform_12, window_bounds = array<i64: 1, 64, 32>}, {transform_indices = @transform_13, window_bounds = array<i64: 1, 1, 32>}, {transform_indices = @transform_14, window_bounds = array<i64: 1, 1, 32>}, {transform_indices = @transform_15, window_bounds = array<i64: 1, 1, 32>}, {transform_indices = @transform_16, window_bounds = array<i64: 1, 1, 32>}]} {
    %c0_i32 = arith.constant 0 : i32
    %0 = arith.cmpi eq, %arg1, %c0_i32 : i32
    %1 = arith.extui %0 : i1 to i32
    %c0_i32_0 = arith.constant 0 : i32
    %2 = arith.cmpi ne, %1, %c0_i32_0 : i32
    scf.if %2 {
      %c0_74 = arith.constant 0 : index
      %c0_75 = arith.constant 0 : index
      %c0_76 = arith.constant 0 : index
      %155 = vector.load %arg2[%c0_74, %c0_75, %c0_76] : memref<1x8x32xbf16, #tpu.memory_space<vmem>>, vector<1x8x32xbf16>
      %156 = vector.shape_cast %155 : vector<1x8x32xbf16> to vector<8x32xbf16>
      %157 = arith.extf %156 : vector<8x32xbf16> to vector<8x32xf32>
      %c0_77 = arith.constant 0 : index
      %c0_78 = arith.constant 0 : index
      %158 = vector.load %arg4[%c0_77, %c0_78] : memref<1x32xf32, #tpu.memory_space<vmem>>, vector<1x32xf32>
      %c0_79 = arith.constant 0 : index
      %c0_80 = arith.constant 0 : index
      %159 = vector.load %arg5[%c0_79, %c0_80] : memref<1x32xf32, #tpu.memory_space<vmem>>, vector<1x32xf32>
      %cst_81 = arith.constant dense<0.000000e+00> : vector<8xf32>
      %160 = vector.multi_reduction <add>, %157, %cst_81 [1] : vector<8x32xf32> to vector<8xf32>
      %161 = vector.shape_cast %160 : vector<8xf32> to vector<8x1xf32>
      %cst_82 = arith.constant 3.200000e+01 : f32
      %162 = vector.broadcast %cst_82 : f32 to vector<8x1xf32>
      %163 = arith.divf %161, %162 : vector<8x1xf32>
      %164 = vector.broadcast %163 : vector<8x1xf32> to vector<8x32xf32>
      %165 = arith.subf %157, %164 : vector<8x32xf32>
      %166 = arith.mulf %165, %165 : vector<8x32xf32>
      %cst_83 = arith.constant dense<0.000000e+00> : vector<8xf32>
      %167 = vector.multi_reduction <add>, %166, %cst_83 [1] : vector<8x32xf32> to vector<8xf32>
      %168 = vector.shape_cast %167 : vector<8xf32> to vector<8x1xf32>
      %cst_84 = arith.constant 3.200000e+01 : f32
      %169 = vector.broadcast %cst_84 : f32 to vector<8x1xf32>
      %170 = arith.divf %168, %169 : vector<8x1xf32>
      %171 = vector.broadcast %163 : vector<8x1xf32> to vector<8x32xf32>
      %172 = arith.subf %157, %171 : vector<8x32xf32>
      %cst_85 = arith.constant 9.99999996E-13 : f32
      %173 = vector.broadcast %cst_85 : f32 to vector<8x1xf32>
      %174 = arith.addf %170, %173 : vector<8x1xf32>
      %175 = math.rsqrt %174 : vector<8x1xf32>
      %176 = vector.broadcast %175 : vector<8x1xf32> to vector<8x32xf32>
      %177 = arith.mulf %172, %176 : vector<8x32xf32>
      %178 = vector.broadcast %158 : vector<1x32xf32> to vector<8x32xf32>
      %179 = arith.mulf %177, %178 : vector<8x32xf32>
      %180 = vector.broadcast %159 : vector<1x32xf32> to vector<8x32xf32>
      %181 = arith.addf %179, %180 : vector<8x32xf32>
      %c0_86 = arith.constant 0 : index
      %c0_87 = arith.constant 0 : index
      %182 = vector.load %arg19[%c0_86, %c0_87] : memref<8x32xf32, #tpu.memory_space<vmem>>, vector<8x32xf32>
      tpu.vector_store %arg19[%c0_86, %c0_87], %181 {strides = array<i32>} : memref<8x32xf32, #tpu.memory_space<vmem>>, vector<8x32xf32>,
    } else {
    }
    %c0 = arith.constant 0 : index
    %c0_1 = arith.constant 0 : index
    %3 = vector.load %arg19[%c0, %c0_1] : memref<8x32xf32, #tpu.memory_space<vmem>>, vector<8x32xf32>
    %c0_2 = arith.constant 0 : index
    %c0_3 = arith.constant 0 : index
    %c0_4 = arith.constant 0 : index
    %4 = vector.load %arg6[%c0_2, %c0_3, %c0_4] : memref<1x32x96xbf16, #tpu.memory_space<vmem>>, vector<1x32x96xbf16>
    %5 = vector.shape_cast %4 : vector<1x32x96xbf16> to vector<32x96xbf16>
    %6 = arith.truncf %3 : vector<8x32xf32> to vector<8x32xbf16>
    %cst = arith.constant dense<0.000000e+00> : vector<8x96xf32>
    %7 = tpu.matmul %6, %5, %cst {dimension_numbers = #tpu.dot_dimension_numbers<[1], [0], [0], [1], [0, 0, 1, 1], [], []>} : vector<8x32xbf16>, vector<32x96xbf16>, vector<8x96xf32> -> vector<8x96xf32>
    %c0_5 = arith.constant 0 : index
    %c0_6 = arith.constant 0 : index
    %c0_7 = arith.constant 0 : index
    %8 = vector.load %arg7[%c0_5, %c0_6, %c0_7] : memref<1x1x96xf32, #tpu.memory_space<vmem>>, vector<1x1x96xf32>
    %9 = vector.shape_cast %8 : vector<1x1x96xf32> to vector<1x96xf32>
    %10 = vector.broadcast %9 : vector<1x96xf32> to vector<8x96xf32>
    %11 = arith.addf %7, %10 : vector<8x96xf32>
    %c0_8 = arith.constant 0 : index
    %c0_9 = arith.constant 0 : index
    %c0_10 = arith.constant 0 : index
    %12 = vector.load %arg3[%c0_8, %c0_9, %c0_10] : memref<1x1x8xf32, #tpu.memory_space<vmem>>, vector<1x1x8xf32>
    %13 = vector.shape_cast %12 : vector<1x1x8xf32> to vector<1x8xf32>
    %14 = vector.extract_strided_slice %11 {offsets = [0, 0], sizes = [8, 16], strides = [1, 1]} : vector<8x96xf32> to vector<8x16xf32>
    %15 = arith.truncf %14 : vector<8x16xf32> to vector<8x16xbf16>
    %16 = vector.extract_strided_slice %11 {offsets = [0, 32], sizes = [8, 16], strides = [1, 1]} : vector<8x96xf32> to vector<8x16xf32>
    %17 = arith.truncf %16 : vector<8x16xf32> to vector<8x16xbf16>
    %18 = vector.extract_strided_slice %11 {offsets = [0, 64], sizes = [8, 16], strides = [1, 1]} : vector<8x96xf32> to vector<8x16xf32>
    %19 = arith.truncf %18 : vector<8x16xf32> to vector<8x16xbf16>
    "tpu.trace_start"() <{level = 10 : i32, message = "qd,kd->qk"}> : () -> ()
    %cst_11 = arith.constant dense<0.000000e+00> : vector<8x8xf32>
    %20 = tpu.matmul %15, %17, %cst_11 {dimension_numbers = #tpu.dot_dimension_numbers<[1], [1], [0], [0], [0, 0, 1, 0], [], []>} : vector<8x16xbf16>, vector<8x16xbf16>, vector<8x8xf32> -> vector<8x8xf32>
    "tpu.trace_stop"() : () -> ()
    %21 = vector.broadcast %13 : vector<1x8xf32> to vector<8x8xf32>
    %22 = arith.addf %20, %21 : vector<8x8xf32>
    %cst_12 = arith.constant dense<0xFF800000> : vector<8xf32>
    %23 = vector.multi_reduction <maximumf>, %22, %cst_12 [1] : vector<8x8xf32> to vector<8xf32>
    %24 = vector.shape_cast %23 : vector<8xf32> to vector<8x1xf32>
    %25 = vector.broadcast %24 : vector<8x1xf32> to vector<8x8xf32>
    %26 = arith.subf %22, %25 : vector<8x8xf32>
    %27 = math.exp %26 : vector<8x8xf32>
    %cst_13 = arith.constant dense<0.000000e+00> : vector<8xf32>
    %28 = vector.multi_reduction <add>, %27, %cst_13 [1] : vector<8x8xf32> to vector<8xf32>
    %29 = vector.shape_cast %28 : vector<8xf32> to vector<8x1xf32>
    %30 = tpu.reciprocal %29 {approx = true} : vector<8x1xf32> -> vector<8x1xf32>
    %31 = vector.broadcast %30 : vector<8x1xf32> to vector<8x8xf32>
    %32 = arith.mulf %27, %31 : vector<8x8xf32>
    %33 = arith.truncf %32 : vector<8x8xf32> to vector<8x8xbf16>
    %cst_14 = arith.constant dense<0.000000e+00> : vector<8x16xf32>
    %34 = tpu.matmul %33, %19, %cst_14 {dimension_numbers = #tpu.dot_dimension_numbers<[1], [0], [0], [1], [0, 0, 1, 1], [], []>} : vector<8x8xbf16>, vector<8x16xbf16>, vector<8x16xf32> -> vector<8x16xf32>
    %35 = arith.truncf %34 : vector<8x16xf32> to vector<8x16xbf16>
    %c0_15 = arith.constant 0 : index
    %c0_16 = arith.constant 0 : index
    %36 = vector.load %arg20[%c0_15, %c0_16] : memref<8x32xbf16, #tpu.memory_space<vmem>>, vector<8x16xbf16>
    tpu.vector_store %arg20[%c0_15, %c0_16], %35 {strides = array<i32>} : memref<8x32xbf16, #tpu.memory_space<vmem>>, vector<8x16xbf16>,
    %37 = vector.extract_strided_slice %11 {offsets = [0, 16], sizes = [8, 16], strides = [1, 1]} : vector<8x96xf32> to vector<8x16xf32>
    %38 = arith.truncf %37 : vector<8x16xf32> to vector<8x16xbf16>
    %39 = vector.extract_strided_slice %11 {offsets = [0, 48], sizes = [8, 16], strides = [1, 1]} : vector<8x96xf32> to vector<8x16xf32>
    %40 = arith.truncf %39 : vector<8x16xf32> to vector<8x16xbf16>
    %41 = vector.extract_strided_slice %11 {offsets = [0, 80], sizes = [8, 16], strides = [1, 1]} : vector<8x96xf32> to vector<8x16xf32>
    %42 = arith.truncf %41 : vector<8x16xf32> to vector<8x16xbf16>
    "tpu.trace_start"() <{level = 10 : i32, message = "qd,kd->qk"}> : () -> ()
    %cst_17 = arith.constant dense<0.000000e+00> : vector<8x8xf32>
    %43 = tpu.matmul %38, %40, %cst_17 {dimension_numbers = #tpu.dot_dimension_numbers<[1], [1], [0], [0], [0, 0, 1, 0], [], []>} : vector<8x16xbf16>, vector<8x16xbf16>, vector<8x8xf32> -> vector<8x8xf32>
    "tpu.trace_stop"() : () -> ()
    %44 = vector.broadcast %13 : vector<1x8xf32> to vector<8x8xf32>
    %45 = arith.addf %43, %44 : vector<8x8xf32>
    %cst_18 = arith.constant dense<0xFF800000> : vector<8xf32>
    %46 = vector.multi_reduction <maximumf>, %45, %cst_18 [1] : vector<8x8xf32> to vector<8xf32>
    %47 = vector.shape_cast %46 : vector<8xf32> to vector<8x1xf32>
    %48 = vector.broadcast %47 : vector<8x1xf32> to vector<8x8xf32>
    %49 = arith.subf %45, %48 : vector<8x8xf32>
    %50 = math.exp %49 : vector<8x8xf32>
    %cst_19 = arith.constant dense<0.000000e+00> : vector<8xf32>
    %51 = vector.multi_reduction <add>, %50, %cst_19 [1] : vector<8x8xf32> to vector<8xf32>
    %52 = vector.shape_cast %51 : vector<8xf32> to vector<8x1xf32>
    %53 = tpu.reciprocal %52 {approx = true} : vector<8x1xf32> -> vector<8x1xf32>
    %54 = vector.broadcast %53 : vector<8x1xf32> to vector<8x8xf32>
    %55 = arith.mulf %50, %54 : vector<8x8xf32>
    %56 = arith.truncf %55 : vector<8x8xf32> to vector<8x8xbf16>
    %cst_20 = arith.constant dense<0.000000e+00> : vector<8x16xf32>
    %57 = tpu.matmul %56, %42, %cst_20 {dimension_numbers = #tpu.dot_dimension_numbers<[1], [0], [0], [1], [0, 0, 1, 1], [], []>} : vector<8x8xbf16>, vector<8x16xbf16>, vector<8x16xf32> -> vector<8x16xf32>
    %58 = arith.truncf %57 : vector<8x16xf32> to vector<8x16xbf16>
    %c0_21 = arith.constant 0 : index
    %c16 = arith.constant 16 : index
    %59 = vector.load %arg20[%c0_21, %c16] : memref<8x32xbf16, #tpu.memory_space<vmem>>, vector<8x16xbf16>
    tpu.vector_store %arg20[%c0_21, %c16], %58 {strides = array<i32>} : memref<8x32xbf16, #tpu.memory_space<vmem>>, vector<8x16xbf16>,
    %c0_22 = arith.constant 0 : index
    %c0_23 = arith.constant 0 : index
    %60 = vector.load %arg20[%c0_22, %c0_23] : memref<8x32xbf16, #tpu.memory_space<vmem>>, vector<8x32xbf16>
    %c0_24 = arith.constant 0 : index
    %c0_25 = arith.constant 0 : index
    %c0_26 = arith.constant 0 : index
    %61 = vector.load %arg8[%c0_24, %c0_25, %c0_26] : memref<1x32x32xbf16, #tpu.memory_space<vmem>>, vector<1x32x32xbf16>
    %62 = vector.shape_cast %61 : vector<1x32x32xbf16> to vector<32x32xbf16>
    %cst_27 = arith.constant dense<0.000000e+00> : vector<8x32xf32>
    %63 = tpu.matmul %60, %62, %cst_27 {dimension_numbers = #tpu.dot_dimension_numbers<[1], [0], [0], [1], [0, 0, 1, 1], [], []>} : vector<8x32xbf16>, vector<32x32xbf16>, vector<8x32xf32> -> vector<8x32xf32>
    %c0_28 = arith.constant 0 : index
    %c0_29 = arith.constant 0 : index
    %c0_30 = arith.constant 0 : index
    %64 = vector.load %arg9[%c0_28, %c0_29, %c0_30] : memref<1x1x32xf32, #tpu.memory_space<vmem>>, vector<1x1x32xf32>
    %65 = vector.shape_cast %64 : vector<1x1x32xf32> to vector<1x32xf32>
    %66 = vector.broadcast %65 : vector<1x32xf32> to vector<8x32xf32>
    %67 = arith.addf %63, %66 : vector<8x32xf32>
    %68 = arith.addf %67, %3 : vector<8x32xf32>
    %c0_31 = arith.constant 0 : index
    %c0_32 = arith.constant 0 : index
    %c0_33 = arith.constant 0 : index
    %69 = vector.load %arg10[%c0_31, %c0_32, %c0_33] : memref<1x1x32xf32, #tpu.memory_space<vmem>>, vector<1x1x32xf32>
    %70 = vector.shape_cast %69 : vector<1x1x32xf32> to vector<1x32xf32>
    %c0_34 = arith.constant 0 : index
    %c0_35 = arith.constant 0 : index
    %c0_36 = arith.constant 0 : index
    %71 = vector.load %arg11[%c0_34, %c0_35, %c0_36] : memref<1x1x32xf32, #tpu.memory_space<vmem>>, vector<1x1x32xf32>
    %72 = vector.shape_cast %71 : vector<1x1x32xf32> to vector<1x32xf32>
    %cst_37 = arith.constant dense<0.000000e+00> : vector<8xf32>
    %73 = vector.multi_reduction <add>, %68, %cst_37 [1] : vector<8x32xf32> to vector<8xf32>
    %74 = vector.shape_cast %73 : vector<8xf32> to vector<8x1xf32>
    %cst_38 = arith.constant 3.200000e+01 : f32
    %75 = vector.broadcast %cst_38 : f32 to vector<8x1xf32>
    %76 = arith.divf %74, %75 : vector<8x1xf32>
    %77 = vector.broadcast %76 : vector<8x1xf32> to vector<8x32xf32>
    %78 = arith.subf %68, %77 : vector<8x32xf32>
    %79 = arith.mulf %78, %78 : vector<8x32xf32>
    %cst_39 = arith.constant dense<0.000000e+00> : vector<8xf32>
    %80 = vector.multi_reduction <add>, %79, %cst_39 [1] : vector<8x32xf32> to vector<8xf32>
    %81 = vector.shape_cast %80 : vector<8xf32> to vector<8x1xf32>
    %cst_40 = arith.constant 3.200000e+01 : f32
    %82 = vector.broadcast %cst_40 : f32 to vector<8x1xf32>
    %83 = arith.divf %81, %82 : vector<8x1xf32>
    %84 = vector.broadcast %76 : vector<8x1xf32> to vector<8x32xf32>
    %85 = arith.subf %68, %84 : vector<8x32xf32>
    %cst_41 = arith.constant 9.99999996E-13 : f32
    %86 = vector.broadcast %cst_41 : f32 to vector<8x1xf32>
    %87 = arith.addf %83, %86 : vector<8x1xf32>
    %88 = math.rsqrt %87 : vector<8x1xf32>
    %89 = vector.broadcast %88 : vector<8x1xf32> to vector<8x32xf32>
    %90 = arith.mulf %85, %89 : vector<8x32xf32>
    %91 = vector.broadcast %70 : vector<1x32xf32> to vector<8x32xf32>
    %92 = arith.mulf %90, %91 : vector<8x32xf32>
    %93 = vector.broadcast %72 : vector<1x32xf32> to vector<8x32xf32>
    %94 = arith.addf %92, %93 : vector<8x32xf32>
    %c0_42 = arith.constant 0 : index
    %c0_43 = arith.constant 0 : index
    %c0_44 = arith.constant 0 : index
    %95 = vector.load %arg12[%c0_42, %c0_43, %c0_44] : memref<1x32x64xbf16, #tpu.memory_space<vmem>>, vector<1x32x64xbf16>
    %96 = vector.shape_cast %95 : vector<1x32x64xbf16> to vector<32x64xbf16>
    %97 = arith.truncf %94 : vector<8x32xf32> to vector<8x32xbf16>
    %cst_45 = arith.constant dense<0.000000e+00> : vector<8x64xf32>
    %98 = tpu.matmul %97, %96, %cst_45 {dimension_numbers = #tpu.dot_dimension_numbers<[1], [0], [0], [1], [0, 0, 1, 1], [], []>} : vector<8x32xbf16>, vector<32x64xbf16>, vector<8x64xf32> -> vector<8x64xf32>
    %c0_46 = arith.constant 0 : index
    %c0_47 = arith.constant 0 : index
    %c0_48 = arith.constant 0 : index
    %99 = vector.load %arg13[%c0_46, %c0_47, %c0_48] : memref<1x1x64xf32, #tpu.memory_space<vmem>>, vector<1x1x64xf32>
    %100 = vector.shape_cast %99 : vector<1x1x64xf32> to vector<1x64xf32>
    %101 = vector.broadcast %100 : vector<1x64xf32> to vector<8x64xf32>
    %102 = arith.addf %98, %101 : vector<8x64xf32>
    %103 = arith.mulf %102, %102 : vector<8x64xf32>
    %104 = arith.mulf %102, %103 : vector<8x64xf32>
    %cst_49 = arith.constant 4.471500e-02 : f32
    %105 = vector.broadcast %cst_49 : f32 to vector<8x64xf32>
    %106 = arith.mulf %105, %104 : vector<8x64xf32>
    %107 = arith.addf %102, %106 : vector<8x64xf32>
    %cst_50 = arith.constant 0.797884583 : f32
    %108 = vector.broadcast %cst_50 : f32 to vector<8x64xf32>
    %109 = arith.mulf %108, %107 : vector<8x64xf32>
    %110 = math.tanh %109 : vector<8x64xf32>
    %cst_51 = arith.constant 1.000000e+00 : f32
    %111 = vector.broadcast %cst_51 : f32 to vector<8x64xf32>
    %112 = arith.addf %111, %110 : vector<8x64xf32>
    %cst_52 = arith.constant 5.000000e-01 : f32
    %113 = vector.broadcast %cst_52 : f32 to vector<8x64xf32>
    %114 = arith.mulf %113, %112 : vector<8x64xf32>
    %115 = arith.mulf %102, %114 : vector<8x64xf32>
    %c0_53 = arith.constant 0 : index
    %c0_54 = arith.constant 0 : index
    %c0_55 = arith.constant 0 : index
    %116 = vector.load %arg14[%c0_53, %c0_54, %c0_55] : memref<1x64x32xbf16, #tpu.memory_space<vmem>>, vector<1x64x32xbf16>
    %117 = vector.shape_cast %116 : vector<1x64x32xbf16> to vector<64x32xbf16>
    %118 = arith.truncf %115 : vector<8x64xf32> to vector<8x64xbf16>
    %cst_56 = arith.constant dense<0.000000e+00> : vector<8x32xf32>
    %119 = tpu.matmul %118, %117, %cst_56 {dimension_numbers = #tpu.dot_dimension_numbers<[1], [0], [0], [1], [0, 0, 1, 1], [], []>} : vector<8x64xbf16>, vector<64x32xbf16>, vector<8x32xf32> -> vector<8x32xf32>
    %c0_57 = arith.constant 0 : index
    %c0_58 = arith.constant 0 : index
    %c0_59 = arith.constant 0 : index
    %120 = vector.load %arg15[%c0_57, %c0_58, %c0_59] : memref<1x1x32xf32, #tpu.memory_space<vmem>>, vector<1x1x32xf32>
    %121 = vector.shape_cast %120 : vector<1x1x32xf32> to vector<1x32xf32>
    %122 = vector.broadcast %121 : vector<1x32xf32> to vector<8x32xf32>
    %123 = arith.addf %119, %122 : vector<8x32xf32>
    %124 = arith.addf %123, %94 : vector<8x32xf32>
    %c0_60 = arith.constant 0 : index
    %c0_61 = arith.constant 0 : index
    %c0_62 = arith.constant 0 : index
    %125 = vector.load %arg16[%c0_60, %c0_61, %c0_62] : memref<1x1x32xf32, #tpu.memory_space<vmem>>, vector<1x1x32xf32>
    %126 = vector.shape_cast %125 : vector<1x1x32xf32> to vector<1x32xf32>
    %c0_63 = arith.constant 0 : index
    %c0_64 = arith.constant 0 : index
    %c0_65 = arith.constant 0 : index
    %127 = vector.load %arg17[%c0_63, %c0_64, %c0_65] : memref<1x1x32xf32, #tpu.memory_space<vmem>>, vector<1x1x32xf32>
    %128 = vector.shape_cast %127 : vector<1x1x32xf32> to vector<1x32xf32>
    %cst_66 = arith.constant dense<0.000000e+00> : vector<8xf32>
    %129 = vector.multi_reduction <add>, %124, %cst_66 [1] : vector<8x32xf32> to vector<8xf32>
    %130 = vector.shape_cast %129 : vector<8xf32> to vector<8x1xf32>
    %cst_67 = arith.constant 3.200000e+01 : f32
    %131 = vector.broadcast %cst_67 : f32 to vector<8x1xf32>
    %132 = arith.divf %130, %131 : vector<8x1xf32>
    %133 = vector.broadcast %132 : vector<8x1xf32> to vector<8x32xf32>
    %134 = arith.subf %124, %133 : vector<8x32xf32>
    %135 = arith.mulf %134, %134 : vector<8x32xf32>
    %cst_68 = arith.constant dense<0.000000e+00> : vector<8xf32>
    %136 = vector.multi_reduction <add>, %135, %cst_68 [1] : vector<8x32xf32> to vector<8xf32>
    %137 = vector.shape_cast %136 : vector<8xf32> to vector<8x1xf32>
    %cst_69 = arith.constant 3.200000e+01 : f32
    %138 = vector.broadcast %cst_69 : f32 to vector<8x1xf32>
    %139 = arith.divf %137, %138 : vector<8x1xf32>
    %140 = vector.broadcast %132 : vector<8x1xf32> to vector<8x32xf32>
    %141 = arith.subf %124, %140 : vector<8x32xf32>
    %cst_70 = arith.constant 9.99999996E-13 : f32
    %142 = vector.broadcast %cst_70 : f32 to vector<8x1xf32>
    %143 = arith.addf %139, %142 : vector<8x1xf32>
    %144 = math.rsqrt %143 : vector<8x1xf32>
    %145 = vector.broadcast %144 : vector<8x1xf32> to vector<8x32xf32>
    %146 = arith.mulf %141, %145 : vector<8x32xf32>
    %147 = vector.broadcast %126 : vector<1x32xf32> to vector<8x32xf32>
    %148 = arith.mulf %146, %147 : vector<8x32xf32>
    %149 = vector.broadcast %128 : vector<1x32xf32> to vector<8x32xf32>
    %150 = arith.addf %148, %149 : vector<8x32xf32>
    %c0_71 = arith.constant 0 : index
    %c0_72 = arith.constant 0 : index
    %151 = vector.load %arg19[%c0_71, %c0_72] : memref<8x32xf32, #tpu.memory_space<vmem>>, vector<8x32xf32>
    tpu.vector_store %arg19[%c0_71, %c0_72], %150 {strides = array<i32>} : memref<8x32xf32, #tpu.memory_space<vmem>>, vector<8x32xf32>,
    %c1_i32 = arith.constant 1 : i32
    %152 = arith.cmpi eq, %arg1, %c1_i32 : i32
    %153 = arith.extui %152 : i1 to i32
    %c0_i32_73 = arith.constant 0 : i32
    %154 = arith.cmpi ne, %153, %c0_i32_73 : i32
    scf.if %154 {
      %155 = vector.extract_strided_slice %150 {offsets = [0, 0], sizes = [1, 32], strides = [1, 1]} : vector<8x32xf32> to vector<1x32xf32>
      %156 = vector.shape_cast %155 : vector<1x32xf32> to vector<1x1x32xf32>
      %c0_74 = arith.constant 0 : index
      %c0_75 = arith.constant 0 : index
      %c0_76 = arith.constant 0 : index
      %157 = vector.load %arg18[%c0_74, %c0_75, %c0_76] : memref<1x1x32xf32, #tpu.memory_space<vmem>>, vector<1x1x32xf32>
      tpu.vector_store %arg18[%c0_74, %c0_75, %c0_76], %156 {strides = array<i32>} : memref<1x1x32xf32, #tpu.memory_space<vmem>>, vector<1x1x32xf32>,
    } else {
    }
    return
  }
  func.func @transform_0(%arg0: i32, %arg1: i32) -> (i32, i32, i32) {
    %c0_i32 = arith.constant 0 : i32
    %c0_i32_0 = arith.constant 0 : i32
    %c0_i32_1 = arith.constant 0 : i32
    return %arg0, %c0_i32, %c0_i32_0 : i32, i32, i32
  }
  func.func @transform_1(%arg0: i32, %arg1: i32) -> (i32, i32, i32) {
    %c0_i32 = arith.constant 0 : i32
    %c0_i32_0 = arith.constant 0 : i32
    %c0_i32_1 = arith.constant 0 : i32
    return %arg0, %c0_i32, %c0_i32_0 : i32, i32, i32
  }
  func.func @transform_2(%arg0: i32, %arg1: i32) -> (i32, i32) {
    %c0_i32 = arith.constant 0 : i32
    %c0_i32_0 = arith.constant 0 : i32
    %c0_i32_1 = arith.constant 0 : i32
    return %c0_i32, %c0_i32_0 : i32, i32
  }
  func.func @transform_3(%arg0: i32, %arg1: i32) -> (i32, i32) {
    %c0_i32 = arith.constant 0 : i32
    %c0_i32_0 = arith.constant 0 : i32
    %c0_i32_1 = arith.constant 0 : i32
    return %c0_i32, %c0_i32_0 : i32, i32
  }
  func.func @transform_4(%arg0: i32, %arg1: i32) -> (i32, i32, i32) {
    %c0_i32 = arith.constant 0 : i32
    %c0_i32_0 = arith.constant 0 : i32
    %c0_i32_1 = arith.constant 0 : i32
    return %arg1, %c0_i32, %c0_i32_0 : i32, i32, i32
  }
  func.func @transform_5(%arg0: i32, %arg1: i32) -> (i32, i32, i32) {
    %c0_i32 = arith.constant 0 : i32
    %c0_i32_0 = arith.constant 0 : i32
    %c0_i32_1 = arith.constant 0 : i32
    return %arg1, %c0_i32, %c0_i32_0 : i32, i32, i32
  }
  func.func @transform_6(%arg0: i32, %arg1: i32) -> (i32, i32, i32) {
    %c0_i32 = arith.constant 0 : i32
    %c0_i32_0 = arith.constant 0 : i32
    %c0_i32_1 = arith.constant 0 : i32
    return %arg1, %c0_i32, %c0_i32_0 : i32, i32, i32
  }
  func.func @transform_7(%arg0: i32, %arg1: i32) -> (i32, i32, i32) {
    %c0_i32 = arith.constant 0 : i32
    %c0_i32_0 = arith.constant 0 : i32
    %c0_i32_1 = arith.constant 0 : i32
    return %arg1, %c0_i32, %c0_i32_0 : i32, i32, i32
  }
  func.func @transform_8(%arg0: i32, %arg1: i32) -> (i32, i32, i32) {
    %c0_i32 = arith.constant 0 : i32
    %c0_i32_0 = arith.constant 0 : i32
    %c0_i32_1 = arith.constant 0 : i32
    return %arg1, %c0_i32, %c0_i32_0 : i32, i32, i32
  }
  func.func @transform_9(%arg0: i32, %arg1: i32) -> (i32, i32, i32) {
    %c0_i32 = arith.constant 0 : i32
    %c0_i32_0 = arith.constant 0 : i32
    %c0_i32_1 = arith.constant 0 : i32
    return %arg1, %c0_i32, %c0_i32_0 : i32, i32, i32
  }
  func.func @transform_10(%arg0: i32, %arg1: i32) -> (i32, i32, i32) {
    %c0_i32 = arith.constant 0 : i32
    %c0_i32_0 = arith.constant 0 : i32
    %c0_i32_1 = arith.constant 0 : i32
    return %arg1, %c0_i32, %c0_i32_0 : i32, i32, i32
  }
  func.func @transform_11(%arg0: i32, %arg1: i32) -> (i32, i32, i32) {
    %c0_i32 = arith.constant 0 : i32
    %c0_i32_0 = arith.constant 0 : i32
    %c0_i32_1 = arith.constant 0 : i32
    return %arg1, %c0_i32, %c0_i32_0 : i32, i32, i32
  }
  func.func @transform_12(%arg0: i32, %arg1: i32) -> (i32, i32, i32) {
    %c0_i32 = arith.constant 0 : i32
    %c0_i32_0 = arith.constant 0 : i32
    %c0_i32_1 = arith.constant 0 : i32
    return %arg1, %c0_i32, %c0_i32_0 : i32, i32, i32
  }
  func.func @transform_13(%arg0: i32, %arg1: i32) -> (i32, i32, i32) {
    %c0_i32 = arith.constant 0 : i32
    %c0_i32_0 = arith.constant 0 : i32
    %c0_i32_1 = arith.constant 0 : i32
    return %arg1, %c0_i32, %c0_i32_0 : i32, i32, i32
  }
  func.func @transform_14(%arg0: i32, %arg1: i32) -> (i32, i32, i32) {
    %c0_i32 = arith.constant 0 : i32
    %c0_i32_0 = arith.constant 0 : i32
    %c0_i32_1 = arith.constant 0 : i32
    return %arg1, %c0_i32, %c0_i32_0 : i32, i32, i32
  }
  func.func @transform_15(%arg0: i32, %arg1: i32) -> (i32, i32, i32) {
    %c0_i32 = arith.constant 0 : i32
    %c0_i32_0 = arith.constant 0 : i32
    %c0_i32_1 = arith.constant 0 : i32
    return %arg1, %c0_i32, %c0_i32_0 : i32, i32, i32
  }
  func.func @transform_16(%arg0: i32, %arg1: i32) -> (i32, i32, i32) {
    %c0_i32 = arith.constant 0 : i32
    %c0_i32_0 = arith.constant 0 : i32
    %c0_i32_1 = arith.constant 0 : i32
    return %arg0, %c0_i32, %c0_i32_0 : i32, i32, i32
  }
}

</mosaic_0001>

<llo_original>
// kernel: emotion_classifier_forward.3
$region0: #{emotion_classifier_forward.3}
  #allocation0 [shape = 'u32[]', space=smem, size = 0x4, offset = 0x4, fixed_abs, tag = 'smem constant byte address 0x4 - core index']
  #allocation1 [shape = 'u32[144,128]{1,0:T(1,128)}', space=vmem, size = 0x12000, scoped, tag = 'internal scratch']
  %s0 = inlined_call_operand.vmem [shape: f32[2,32], index: 0, kind: input, shape index: {}]
  %s1 = inlined_call_operand.vmem [shape: bf16[32,32], index: 1, kind: input, shape index: {}]
  %s2 = inlined_call_operand.vmem [shape: f32[1,32], index: 2, kind: input, shape index: {}]
  %s3 = inlined_call_operand.vmem [shape: bf16[32,128], index: 3, kind: input, shape index: {}]
  %s4 = inlined_call_operand.vmem [shape: f32[1,128], index: 4, kind: input, shape index: {}]
  %s5 = inlined_call_operand.hbm [shape: f32[2,128], index: 5, kind: output, shape index: {}]
  %s6 = sld [smem:[#allocation0]]
  $region30: #{emotion_classifier_forward.3} parent=0
    _
  %s8 = ssub.s32 1, %s6
  %s9 = scalar_select 0, %s8, %s6
  $region1: #{emotion_classifier_forward.3} parent=0
    #allocation2 [shape = 'u8[1024]{0}', space=vmem, size = 0x400, scoped, tag = 'output window, operand 0, single buffered']
    #allocation3 [shape = 's32[1]{0}', space=sflag, size = 0x4, scoped, tag = 'scoped memory for emotion_classifier_forward.3']
    %10 = vsyncpa [#allocation3], 0
    // Predicated region
    $region2: #{emotion_classifier_forward.3} parent=1 // pred_check
      _
    $region3: #{emotion_classifier_forward.3} parent=1 // pred_check_branch
      %12 = sbr.rel (0) target = $region5
    $region4: #{emotion_classifier_forward.3} parent=1 // pred_region
      _
    $region5: #{emotion_classifier_forward.3} parent=1 // pred_fallthru
      _
    // Predicated region
    $region6: #{emotion_classifier_forward.3} parent=1 // pred_check
      _
    $region7: #{emotion_classifier_forward.3} parent=1 // pred_check_branch
      %14 = sbr.rel (0) target = $region9
    $region8: #{emotion_classifier_forward.3} parent=1 // pred_region
      _
    $region9: #{emotion_classifier_forward.3} parent=1 // pred_fallthru
      _
    // Predicated region
    $region10: #{emotion_classifier_forward.3} parent=1 // pred_check
      _
    $region11: #{emotion_classifier_forward.3} parent=1 // pred_check_branch
      %16 = sbr.rel (0) target = $region13
    $region12: #{emotion_classifier_forward.3} parent=1 // pred_region
      _
    $region13: #{emotion_classifier_forward.3} parent=1 // pred_fallthru
      _
    // Predicated region
    $region14: #{emotion_classifier_forward.3} parent=1 // pred_check
      _
    $region15: #{emotion_classifier_forward.3} parent=1 // pred_check_branch
      %18 = sbr.rel (0) target = $region17
    $region16: #{emotion_classifier_forward.3} parent=1 // pred_region
      _
    $region17: #{emotion_classifier_forward.3} parent=1 // pred_fallthru
      _
    // Predicated region
    $region18: #{emotion_classifier_forward.3} parent=1 // pred_check
      _
    $region19: #{emotion_classifier_forward.3} parent=1 // pred_check_branch
      %20 = sbr.rel (0) target = $region21
    $region20: #{emotion_classifier_forward.3} parent=1 // pred_region
      _
    $region21: #{emotion_classifier_forward.3} parent=1 // pred_fallthru
      _
    %v22 = vld [vmem:[%s0] sm:$0x3]
    %v23 = vld [vmem:[%s1] sm:$0xf]
    %v24 = vld [vmem:[%s1 + $0x4] sm:$0xf]
    %v25 = vld [vmem:[%s1 + $0x8] sm:$0xf]
    %v26 = vld [vmem:[%s1 + $0xc] sm:$0xf]
    %v27 = vpack.c.bf16 %v22, %v22
    %v28 = vld [vmem:[%s2] sm:$0x1]
    %v30 = vlaneseq
    %v31 = vshrl.u32 %v30, 7
    %v32 = vsub.s32 0, %v31
    %v33 = vrot.slane %v28, %v32
    %v39 = vunpack.c.l.b16 %v23
    %v40 = vunpack.c.l.b16 %v24
    %v41 = vunpack.c.l.b16 %v25
    %v42 = vunpack.c.l.b16 %v26
    %v43 = vpack.c.b16 %v40, %v39
    %v44 = vpack.c.b16 %v42, %v41
    %vm47 = vcmask 261120
    %v49 = vsel %vm47, %v27, 0
    %51 = vmatprep.subr.bf16.mxu0 0
    %52 = vmatpush1.bf16.msra.mxu0 0
    %53 = vmatprep.subr.bf16.mxu0 0
    %54 = vmatpush1.bf16.msra.mxu0 0
    %55 = vmatprep.subr.bf16.mxu0 0
    %56 = vmatpush1.bf16.msra.mxu0 0
    %57 = vmatprep.subr.bf16.mxu0 0
    %58 = vmatpush1.bf16.msra.mxu0 0
    %59 = vmatprep.subr.bf16.mxu0 0
    %60 = vmatpush1.bf16.msra.mxu0 0
    %61 = vmatprep.subr.bf16.mxu0 0
    %62 = vmatpush1.bf16.msra.mxu0 0
    %63 = vmatprep.subr.bf16.mxu0 0
    %64 = vmatpush1.bf16.msra.mxu0 %v44
    %65 = vmatprep.subr.bf16.mxu0 0
    %66 = vmatpush1.bf16.msra.mxu0 %v43
    %67 = vmatprep.subr.bf16.mxu0 0
    %68 = vmatpush2.bf16.msra.mxu0 0
    %69 = vmatprep.subr.bf16.mxu0 0
    %70 = vmatpush2.bf16.msra.mxu0 0
    %71 = vmatprep.subr.bf16.mxu0 0
    %72 = vmatpush2.bf16.msra.mxu0 0
    %73 = vmatprep.subr.bf16.mxu0 0
    %74 = vmatpush2.bf16.msra.mxu0 0
    %75 = vmatprep.subr.bf16.mxu0 0
    %76 = vmatpush2.bf16.msra.mxu0 0
    %77 = vmatprep.subr.bf16.mxu0 0
    %78 = vmatpush2.bf16.msra.mxu0 0
    %79 = vmatprep.subr.bf16.mxu0 0
    %80 = vmatpush2.bf16.msra.mxu0 0
    %81 = vmatprep.subr.bf16.mxu0 0
    %82 = vmatpush2.bf16.msra.mxu0 0
    %83 = vmatprep.mubr.bf16.mxu0 0
    %84 = vmatmul.mubr.bf16.gmra.mxu0 %v49
    %v85 = vpop.f32.mrf.mxu0
    %v86 = vadd.f32 %v33, %v85
    %v87 = vpop.f32.mrf.mxu0
    %v88 = vpop.f32.mrf.mxu0
    %v89 = vpop.f32.mrf.mxu0
    %90 = vdwg.mxu0
    %v91 = vtanh.pop %v86
    %v92 = vld [vmem:[%s3] sm:$0xf]
    %v93 = vld [vmem:[%s3 + $0x4] sm:$0xf]
    %v94 = vld [vmem:[%s3 + $0x8] sm:$0xf]
    %v95 = vld [vmem:[%s3 + $0xc] sm:$0xf]
    %v96 = vpack.c.bf16 %v91, %v91
    %v97 = vld [vmem:[%s4] sm:$0x1]
    %v99 = vlaneseq
    %v100 = vshrl.u32 %v99, 7
    %v101 = vsub.s32 0, %v100
    %v102 = vrot.slane %v97, %v101
    %v108 = vunpack.c.l.b16 %v92
    %v109 = vunpack.c.l.b16 %v93
    %v110 = vunpack.c.l.b16 %v94
    %v111 = vunpack.c.l.b16 %v95
    %v112 = vpack.c.b16 %v109, %v108
    %v113 = vpack.c.b16 %v111, %v110
    %v117 = vsel %vm47, %v96, 0
    %119 = vmatprep.subr.bf16.mxu0 0
    %120 = vmatpush1.bf16.msra.mxu0 0
    %121 = vmatprep.subr.bf16.mxu0 0
    %122 = vmatpush1.bf16.msra.mxu0 0
    %123 = vmatprep.subr.bf16.mxu0 0
    %124 = vmatpush1.bf16.msra.mxu0 0
    %125 = vmatprep.subr.bf16.mxu0 0
    %126 = vmatpush1.bf16.msra.mxu0 0
    %127 = vmatprep.subr.bf16.mxu0 0
    %128 = vmatpush1.bf16.msra.mxu0 0
    %129 = vmatprep.subr.bf16.mxu0 0
    %130 = vmatpush1.bf16.msra.mxu0 0
    %131 = vmatprep.subr.bf16.mxu0 0
    %132 = vmatpush1.bf16.msra.mxu0 %v113
    %133 = vmatprep.subr.bf16.mxu0 0
    %134 = vmatpush1.bf16.msra.mxu0 %v112
    %135 = vmatprep.subr.bf16.mxu0 0
    %136 = vmatpush2.bf16.msra.mxu0 0
    %137 = vmatprep.subr.bf16.mxu0 0
    %138 = vmatpush2.bf16.msra.mxu0 0
    %139 = vmatprep.subr.bf16.mxu0 0
    %140 = vmatpush2.bf16.msra.mxu0 0
    %141 = vmatprep.subr.bf16.mxu0 0
    %142 = vmatpush2.bf16.msra.mxu0 0
    %143 = vmatprep.subr.bf16.mxu0 0
    %144 = vmatpush2.bf16.msra.mxu0 0
    %145 = vmatprep.subr.bf16.mxu0 0
    %146 = vmatpush2.bf16.msra.mxu0 0
    %147 = vmatprep.subr.bf16.mxu0 0
    %148 = vmatpush2.bf16.msra.mxu0 0
    %149 = vmatprep.subr.bf16.mxu0 0
    %150 = vmatpush2.bf16.msra.mxu0 0
    %151 = vmatprep.mubr.bf16.mxu0 0
    %152 = vmatmul.mubr.bf16.gmra.mxu0 %v117
    %v153 = vpop.f32.mrf.mxu0
    %v154 = vadd.f32 %v102, %v153
    %v155 = vpop.f32.mrf.mxu0
    %v156 = vpop.f32.mrf.mxu0
    %v157 = vpop.f32.mrf.mxu0
    %158 = vdwg.mxu0
    %159 = vst [vmem:[#allocation2] sm:$0x3] %v154
    // Predicated region
    $region22: #{emotion_classifier_forward.3} parent=1 // pred_check
      _
    $region23: #{emotion_classifier_forward.3} parent=1 // pred_check_branch
      %161 = sbr.rel (0) target = $region25
    $region24: #{emotion_classifier_forward.3} parent=1 // pred_region
      %s163 = ssub.s32 32, 32
      %164 = vsyncadd [#allocation3], %s163
      %s166 = sshll.u32 [#allocation2], 4
      %s167 = int_to_ptr.vmem [resolvable:$true] %s166
      %169 = dma.vmem_to_hbm [thread:$0]  %s167, 32, %s5, [#allocation3]
    $region25: #{emotion_classifier_forward.3} parent=1 // pred_fallthru
      _
    // Predicated region
    $region26: #{emotion_classifier_forward.3} parent=1 // pred_check
      _
    $region27: #{emotion_classifier_forward.3} parent=1 // pred_check_branch
      %171 = sbr.rel (0) target = $region29
    $region28: #{emotion_classifier_forward.3} parent=1 // pred_region
      %172 = dma.done [#allocation3], 32
    $region29: #{emotion_classifier_forward.3} parent=1 // pred_fallthru
      _
    %173 = vsyncpa [#allocation3], 1

// kernel: emotion_classifier_forward.2
$region0: #{emotion_classifier_forward.2}
  #allocation0 [shape = 'u32[]', space=smem, size = 0x4, offset = 0x4, fixed_abs, tag = 'smem constant byte address 0x4 - core index']
  #allocation1 [shape = 'u32[144,128]{1,0:T(1,128)}', space=vmem, size = 0x12000, scoped, tag = 'internal scratch']
  #allocation2 [shape = 'f32[8,32]{1,0:T(8,128)}', space=vmem, size = 0x1000, scoped, tag = 'scratch operand']
  #allocation3 [shape = 'bf16[8,32]{1,0:T(8,128)(2,1)}', space=vmem, size = 0x800, scoped, tag = 'scratch operand']
  %s0 = inlined_call_operand.vmem [shape: bf16[2,8,32], index: 0, kind: input, shape index: {}]
  %s1 = inlined_call_operand.vmem [shape: f32[2,1,8], index: 1, kind: input, shape index: {}]
  %s2 = inlined_call_operand.vmem [shape: f32[1,32], index: 2, kind: input, shape index: {}]
  %s3 = inlined_call_operand.vmem [shape: f32[1,32], index: 3, kind: input, shape index: {}]
  %s4 = inlined_call_operand.vmem [shape: bf16[2,32,96], index: 4, kind: input, shape index: {}]
  %s5 = inlined_call_operand.vmem [shape: f32[2,1,96], index: 5, kind: input, shape index: {}]
  %s6 = inlined_call_operand.vmem [shape: bf16[2,32,32], index: 6, kind: input, shape index: {}]
  %s7 = inlined_call_operand.vmem [shape: f32[2,1,32], index: 7, kind: input, shape index: {}, may-alias: {7,9,13,15}]
  %s8 = inlined_call_operand.vmem [shape: f32[2,1,32], index: 8, kind: input, shape index: {}, may-alias: {8,14}]
  %s9 = inlined_call_operand.vmem [shape: f32[2,1,32], index: 9, kind: input, shape index: {}, may-alias: {7,9,13,15}]
  %s10 = inlined_call_operand.vmem [shape: bf16[2,32,64], index: 10, kind: input, shape index: {}]
  %s11 = inlined_call_operand.vmem [shape: f32[2,1,64], index: 11, kind: input, shape index: {}]
  %s12 = inlined_call_operand.vmem [shape: bf16[2,64,32], index: 12, kind: input, shape index: {}]
  %s13 = inlined_call_operand.vmem [shape: f32[2,1,32], index: 13, kind: input, shape index: {}, may-alias: {7,9,13,15}]
  %s14 = inlined_call_operand.vmem [shape: f32[2,1,32], index: 14, kind: input, shape index: {}, may-alias: {8,14}]
  %s15 = inlined_call_operand.vmem [shape: f32[2,1,32], index: 15, kind: input, shape index: {}, may-alias: {7,9,13,15}]
  %s16 = inlined_call_operand.vmem [shape: f32[2,1,32], index: 16, kind: output, shape index: {}]
  %s17 = sld [smem:[#allocation0]]
  $region105: #{emotion_classifier_forward.2} parent=0
    _
  %s19 = ssub.s32 1, %s17
  %s20 = scalar_select 0, %s19, %s17
  loop: start=0, step=1, limit=6
  $region2: #{emotion_classifier_forward.2} parent=0 // loop_pre_header
    _
  $region3: #{emotion_classifier_forward.2} parent=0 // loop_header
    %s22 = sphi 0, %s26
    %p23 = scmp.ge.s32.totalorder %s22, 6
    %s29 = sphi 0, %s41
    %s30 = sphi 0, %s37
    %s31 = sphi 0, %s29
    %s32 = sphi 0, %s30
    %s33 = sphi 0, %s31
    %s34 = sphi 0, %s32
    %s44 = sphi 0, %s46
    %s47 = sphi 0, %s44
    %s48 = sphi 0, %s47
    %s64 = sphi 0, %s48
    %s70 = sphi 0, %s72
    %s73 = sphi 0, %s70
    %s74 = sphi 0, %s73
    %s90 = sphi 0, %s74
    %s94 = sphi 0, %s94
    %s96 = sphi 0, %s94
    %s97 = sphi 0, %s96
    %s111 = sphi 0, %s97
    %s115 = sphi 0, %s115
    %s117 = sphi 0, %s115
    %s118 = sphi 0, %s117
    %s132 = sphi 0, %s118
    %s138 = sphi 0, %s140
    %s141 = sphi 0, %s138
    %s142 = sphi 0, %s141
    %s158 = sphi 0, %s142
    %s164 = sphi 0, %s166
    %s167 = sphi 0, %s164
    %s168 = sphi 0, %s167
    %s184 = sphi 0, %s168
    %s190 = sphi 0, %s192
    %s193 = sphi 0, %s190
    %s194 = sphi 0, %s193
    %s210 = sphi 0, %s194
    %s216 = sphi 0, %s218
    %s219 = sphi 0, %s216
    %s220 = sphi 0, %s219
    %s236 = sphi 0, %s220
    %s242 = sphi 0, %s244
    %s245 = sphi 0, %s242
    %s246 = sphi 0, %s245
    %s262 = sphi 0, %s246
    %s268 = sphi 0, %s270
    %s271 = sphi 0, %s268
    %s272 = sphi 0, %s271
    %s288 = sphi 0, %s272
    %s294 = sphi 0, %s296
    %s297 = sphi 0, %s294
    %s298 = sphi 0, %s297
    %s314 = sphi 0, %s298
    %s320 = sphi 0, %s322
    %s323 = sphi 0, %s320
    %s324 = sphi 0, %s323
    %s340 = sphi 0, %s324
    %s346 = sphi 0, %s348
    %s349 = sphi 0, %s346
    %s350 = sphi 0, %s349
    %s366 = sphi 0, %s350
    %s372 = sphi 0, %s374
    %s375 = sphi 0, %s372
    %s376 = sphi 0, %s375
    %s392 = sphi 0, %s376
    %s398 = sphi 0, %s400
    %s401 = sphi 0, %s398
    %s402 = sphi 0, %s401
    %s418 = sphi 0, %s402
    %s424 = sphi 0, %s426
    %s427 = sphi 0, %s424
    %s428 = sphi 0, %s427
    %s444 = sphi 0, %s428
    %s450 = sphi 0, %s452
    %s453 = sphi 0, %s450
    %s454 = sphi 0, %s453
    %s470 = sphi 0, %s454
  $region4: #{emotion_classifier_forward.2} parent=0 // loop_header_branch
    %25 = sbr.rel (%p23) target = $region8
  $region5: #{emotion_classifier_forward.2} parent=0 // loop_body
    %s27 = ssub.s32 %s22, 1
    %s28 = ssub.s32 %s22, 2
    %s35 = sadd.s32 1, %s30
    %p36 = scmp.ge.s32.totalorder %s35, 2
    %s37 = scalar_select %p36, 0, %s35
    %s38 = sadd.s32 1, %s29
    %s39 = scalar_select %p36, %s38, %s29
    %p40 = scmp.ge.s32.totalorder %s39, 2
    %s41 = scalar_select %p40, 0, %s39
    %s42 = ssub.s32 %s29, %s41
    %p43 = scmp.eq.s32.totalorder %s42, 0
    %s45 = sadd.s32 %s44, 1
    %s46 = scalar_select %p43, %s44, %s45
    %p49 = pneg %p43
    %p50 = scmp.eq.s32.totalorder %s22, 3
    %p51 = por %p49, %p50
    %p52 = scmp.ne.s32.totalorder %s44, %s47
    %p53 = scmp.eq.s32.totalorder %s22, 0
    %p54 = por %p52, %p53
    %p55 = scmp.ne.s32.totalorder %s44, %s47
    %p56 = scmp.eq.s32.totalorder %s27, 3
    %p57 = por %p55, %p56
    %p58 = scmp.ne.s32.totalorder %s47, %s48
    %p59 = scmp.eq.s32.totalorder %s27, 0
    %p60 = por %p58, %p59
    %p61 = scmp.ne.s32.totalorder %s47, %s48
    %p62 = scmp.eq.s32.totalorder %s28, 3
    %p63 = por %p61, %p62
    %p65 = scmp.ne.s32.totalorder %s48, %s64
    %p66 = scmp.eq.s32.totalorder %s28, 0
    %p67 = por %p65, %p66
    %s68 = ssub.s32 %s29, %s41
    %p69 = scmp.eq.s32.totalorder %s68, 0
    %s71 = sadd.s32 %s70, 1
    %s72 = scalar_select %p69, %s70, %s71
    %p75 = pneg %p69
    %p76 = scmp.eq.s32.totalorder %s22, 3
    %p77 = por %p75, %p76
    %p78 = scmp.ne.s32.totalorder %s70, %s73
    %p79 = scmp.eq.s32.totalorder %s22, 0
    %p80 = por %p78, %p79
    %p81 = scmp.ne.s32.totalorder %s70, %s73
    %p82 = scmp.eq.s32.totalorder %s27, 3
    %p83 = por %p81, %p82
    %p84 = scmp.ne.s32.totalorder %s73, %s74
    %p85 = scmp.eq.s32.totalorder %s27, 0
    %p86 = por %p84, %p85
    %p87 = scmp.ne.s32.totalorder %s73, %s74
    %p88 = scmp.eq.s32.totalorder %s28, 3
    %p89 = por %p87, %p88
    %p91 = scmp.ne.s32.totalorder %s74, %s90
    %p92 = scmp.eq.s32.totalorder %s28, 0
    %p93 = por %p91, %p92
    %s95 = sadd.s32 %s94, 1
    %p98 = scmp.eq.s32.totalorder %s22, 3
    %p99 = scmp.ne.s32.totalorder %s94, %s96
    %p100 = scmp.eq.s32.totalorder %s22, 0
    %p101 = por %p99, %p100
    %p102 = scmp.ne.s32.totalorder %s94, %s96
    %p103 = scmp.eq.s32.totalorder %s27, 3
    %p104 = por %p102, %p103
    %p105 = scmp.ne.s32.totalorder %s96, %s97
    %p106 = scmp.eq.s32.totalorder %s27, 0
    %p107 = por %p105, %p106
    %p108 = scmp.ne.s32.totalorder %s96, %s97
    %p109 = scmp.eq.s32.totalorder %s28, 3
    %p110 = por %p108, %p109
    %p112 = scmp.ne.s32.totalorder %s97, %s111
    %p113 = scmp.eq.s32.totalorder %s28, 0
    %p114 = por %p112, %p113
    %s116 = sadd.s32 %s115, 1
    %p119 = scmp.eq.s32.totalorder %s22, 3
    %p120 = scmp.ne.s32.totalorder %s115, %s117
    %p121 = scmp.eq.s32.totalorder %s22, 0
    %p122 = por %p120, %p121
    %p123 = scmp.ne.s32.totalorder %s115, %s117
    %p124 = scmp.eq.s32.totalorder %s27, 3
    %p125 = por %p123, %p124
    %p126 = scmp.ne.s32.totalorder %s117, %s118
    %p127 = scmp.eq.s32.totalorder %s27, 0
    %p128 = por %p126, %p127
    %p129 = scmp.ne.s32.totalorder %s117, %s118
    %p130 = scmp.eq.s32.totalorder %s28, 3
    %p131 = por %p129, %p130
    %p133 = scmp.ne.s32.totalorder %s118, %s132
    %p134 = scmp.eq.s32.totalorder %s28, 0
    %p135 = por %p133, %p134
    %s136 = ssub.s32 %s30, %s37
    %p137 = scmp.eq.s32.totalorder %s136, 0
    %s139 = sadd.s32 %s138, 1
    %s140 = scalar_select %p137, %s138, %s139
    %p143 = pneg %p137
    %p144 = scmp.eq.s32.totalorder %s22, 3
    %p145 = por %p143, %p144
    %p146 = scmp.ne.s32.totalorder %s138, %s141
    %p147 = scmp.eq.s32.totalorder %s22, 0
    %p148 = por %p146, %p147
    %p149 = scmp.ne.s32.totalorder %s138, %s141
    %p150 = scmp.eq.s32.totalorder %s27, 3
    %p151 = por %p149, %p150
    %p152 = scmp.ne.s32.totalorder %s141, %s142
    %p153 = scmp.eq.s32.totalorder %s27, 0
    %p154 = por %p152, %p153
    %p155 = scmp.ne.s32.totalorder %s141, %s142
    %p156 = scmp.eq.s32.totalorder %s28, 3
    %p157 = por %p155, %p156
    %p159 = scmp.ne.s32.totalorder %s142, %s158
    %p160 = scmp.eq.s32.totalorder %s28, 0
    %p161 = por %p159, %p160
    %s162 = ssub.s32 %s30, %s37
    %p163 = scmp.eq.s32.totalorder %s162, 0
    %s165 = sadd.s32 %s164, 1
    %s166 = scalar_select %p163, %s164, %s165
    %p169 = pneg %p163
    %p170 = scmp.eq.s32.totalorder %s22, 3
    %p171 = por %p169, %p170
    %p172 = scmp.ne.s32.totalorder %s164, %s167
    %p173 = scmp.eq.s32.totalorder %s22, 0
    %p174 = por %p172, %p173
    %p175 = scmp.ne.s32.totalorder %s164, %s167
    %p176 = scmp.eq.s32.totalorder %s27, 3
    %p177 = por %p175, %p176
    %p178 = scmp.ne.s32.totalorder %s167, %s168
    %p179 = scmp.eq.s32.totalorder %s27, 0
    %p180 = por %p178, %p179
    %p181 = scmp.ne.s32.totalorder %s167, %s168
    %p182 = scmp.eq.s32.totalorder %s28, 3
    %p183 = por %p181, %p182
    %p185 = scmp.ne.s32.totalorder %s168, %s184
    %p186 = scmp.eq.s32.totalorder %s28, 0
    %p187 = por %p185, %p186
    %s188 = ssub.s32 %s30, %s37
    %p189 = scmp.eq.s32.totalorder %s188, 0
    %s191 = sadd.s32 %s190, 1
    %s192 = scalar_select %p189, %s190, %s191
    %p195 = pneg %p189
    %p196 = scmp.eq.s32.totalorder %s22, 3
    %p197 = por %p195, %p196
    %p198 = scmp.ne.s32.totalorder %s190, %s193
    %p199 = scmp.eq.s32.totalorder %s22, 0
    %p200 = por %p198, %p199
    %p201 = scmp.ne.s32.totalorder %s190, %s193
    %p202 = scmp.eq.s32.totalorder %s27, 3
    %p203 = por %p201, %p202
    %p204 = scmp.ne.s32.totalorder %s193, %s194
    %p205 = scmp.eq.s32.totalorder %s27, 0
    %p206 = por %p204, %p205
    %p207 = scmp.ne.s32.totalorder %s193, %s194
    %p208 = scmp.eq.s32.totalorder %s28, 3
    %p209 = por %p207, %p208
    %p211 = scmp.ne.s32.totalorder %s194, %s210
    %p212 = scmp.eq.s32.totalorder %s28, 0
    %p213 = por %p211, %p212
    %s214 = ssub.s32 %s30, %s37
    %p215 = scmp.eq.s32.totalorder %s214, 0
    %s217 = sadd.s32 %s216, 1
    %s218 = scalar_select %p215, %s216, %s217
    %p221 = pneg %p215
    %p222 = scmp.eq.s32.totalorder %s22, 3
    %p223 = por %p221, %p222
    %p224 = scmp.ne.s32.totalorder %s216, %s219
    %p225 = scmp.eq.s32.totalorder %s22, 0
    %p226 = por %p224, %p225
    %p227 = scmp.ne.s32.totalorder %s216, %s219
    %p228 = scmp.eq.s32.totalorder %s27, 3
    %p229 = por %p227, %p228
    %p230 = scmp.ne.s32.totalorder %s219, %s220
    %p231 = scmp.eq.s32.totalorder %s27, 0
    %p232 = por %p230, %p231
    %p233 = scmp.ne.s32.totalorder %s219, %s220
    %p234 = scmp.eq.s32.totalorder %s28, 3
    %p235 = por %p233, %p234
    %p237 = scmp.ne.s32.totalorder %s220, %s236
    %p238 = scmp.eq.s32.totalorder %s28, 0
    %p239 = por %p237, %p238
    %s240 = ssub.s32 %s30, %s37
    %p241 = scmp.eq.s32.totalorder %s240, 0
    %s243 = sadd.s32 %s242, 1
    %s244 = scalar_select %p241, %s242, %s243
    %p247 = pneg %p241
    %p248 = scmp.eq.s32.totalorder %s22, 3
    %p249 = por %p247, %p248
    %p250 = scmp.ne.s32.totalorder %s242, %s245
    %p251 = scmp.eq.s32.totalorder %s22, 0
    %p252 = por %p250, %p251
    %p253 = scmp.ne.s32.totalorder %s242, %s245
    %p254 = scmp.eq.s32.totalorder %s27, 3
    %p255 = por %p253, %p254
    %p256 = scmp.ne.s32.totalorder %s245, %s246
    %p257 = scmp.eq.s32.totalorder %s27, 0
    %p258 = por %p256, %p257
    %p259 = scmp.ne.s32.totalorder %s245, %s246
    %p260 = scmp.eq.s32.totalorder %s28, 3
    %p261 = por %p259, %p260
    %p263 = scmp.ne.s32.totalorder %s246, %s262
    %p264 = scmp.eq.s32.totalorder %s28, 0
    %p265 = por %p263, %p264
    %s266 = ssub.s32 %s30, %s37
    %p267 = scmp.eq.s32.totalorder %s266, 0
    %s269 = sadd.s32 %s268, 1
    %s270 = scalar_select %p267, %s268, %s269
    %p273 = pneg %p267
    %p274 = scmp.eq.s32.totalorder %s22, 3
    %p275 = por %p273, %p274
    %p276 = scmp.ne.s32.totalorder %s268, %s271
    %p277 = scmp.eq.s32.totalorder %s22, 0
    %p278 = por %p276, %p277
    %p279 = scmp.ne.s32.totalorder %s268, %s271
    %p280 = scmp.eq.s32.totalorder %s27, 3
    %p281 = por %p279, %p280
    %p282 = scmp.ne.s32.totalorder %s271, %s272
    %p283 = scmp.eq.s32.totalorder %s27, 0
    %p284 = por %p282, %p283
    %p285 = scmp.ne.s32.totalorder %s271, %s272
    %p286 = scmp.eq.s32.totalorder %s28, 3
    %p287 = por %p285, %p286
    %p289 = scmp.ne.s32.totalorder %s272, %s288
    %p290 = scmp.eq.s32.totalorder %s28, 0
    %p291 = por %p289, %p290
    %s292 = ssub.s32 %s30, %s37
    %p293 = scmp.eq.s32.totalorder %s292, 0
    %s295 = sadd.s32 %s294, 1
    %s296 = scalar_select %p293, %s294, %s295
    %p299 = pneg %p293
    %p300 = scmp.eq.s32.totalorder %s22, 3
    %p301 = por %p299, %p300
    %p302 = scmp.ne.s32.totalorder %s294, %s297
    %p303 = scmp.eq.s32.totalorder %s22, 0
    %p304 = por %p302, %p303
    %p305 = scmp.ne.s32.totalorder %s294, %s297
    %p306 = scmp.eq.s32.totalorder %s27, 3
    %p307 = por %p305, %p306
    %p308 = scmp.ne.s32.totalorder %s297, %s298
    %p309 = scmp.eq.s32.totalorder %s27, 0
    %p310 = por %p308, %p309
    %p311 = scmp.ne.s32.totalorder %s297, %s298
    %p312 = scmp.eq.s32.totalorder %s28, 3
    %p313 = por %p311, %p312
    %p315 = scmp.ne.s32.totalorder %s298, %s314
    %p316 = scmp.eq.s32.totalorder %s28, 0
    %p317 = por %p315, %p316
    %s318 = ssub.s32 %s30, %s37
    %p319 = scmp.eq.s32.totalorder %s318, 0
    %s321 = sadd.s32 %s320, 1
    %s322 = scalar_select %p319, %s320, %s321
    %p325 = pneg %p319
    %p326 = scmp.eq.s32.totalorder %s22, 3
    %p327 = por %p325, %p326
    %p328 = scmp.ne.s32.totalorder %s320, %s323
    %p329 = scmp.eq.s32.totalorder %s22, 0
    %p330 = por %p328, %p329
    %p331 = scmp.ne.s32.totalorder %s320, %s323
    %p332 = scmp.eq.s32.totalorder %s27, 3
    %p333 = por %p331, %p332
    %p334 = scmp.ne.s32.totalorder %s323, %s324
    %p335 = scmp.eq.s32.totalorder %s27, 0
    %p336 = por %p334, %p335
    %p337 = scmp.ne.s32.totalorder %s323, %s324
    %p338 = scmp.eq.s32.totalorder %s28, 3
    %p339 = por %p337, %p338
    %p341 = scmp.ne.s32.totalorder %s324, %s340
    %p342 = scmp.eq.s32.totalorder %s28, 0
    %p343 = por %p341, %p342
    %s344 = ssub.s32 %s30, %s37
    %p345 = scmp.eq.s32.totalorder %s344, 0
    %s347 = sadd.s32 %s346, 1
    %s348 = scalar_select %p345, %s346, %s347
    %p351 = pneg %p345
    %p352 = scmp.eq.s32.totalorder %s22, 3
    %p353 = por %p351, %p352
    %p354 = scmp.ne.s32.totalorder %s346, %s349
    %p355 = scmp.eq.s32.totalorder %s22, 0
    %p356 = por %p354, %p355
    %p357 = scmp.ne.s32.totalorder %s346, %s349
    %p358 = scmp.eq.s32.totalorder %s27, 3
    %p359 = por %p357, %p358
    %p360 = scmp.ne.s32.totalorder %s349, %s350
    %p361 = scmp.eq.s32.totalorder %s27, 0
    %p362 = por %p360, %p361
    %p363 = scmp.ne.s32.totalorder %s349, %s350
    %p364 = scmp.eq.s32.totalorder %s28, 3
    %p365 = por %p363, %p364
    %p367 = scmp.ne.s32.totalorder %s350, %s366
    %p368 = scmp.eq.s32.totalorder %s28, 0
    %p369 = por %p367, %p368
    %s370 = ssub.s32 %s30, %s37
    %p371 = scmp.eq.s32.totalorder %s370, 0
    %s373 = sadd.s32 %s372, 1
    %s374 = scalar_select %p371, %s372, %s373
    %p377 = pneg %p371
    %p378 = scmp.eq.s32.totalorder %s22, 3
    %p379 = por %p377, %p378
    %p380 = scmp.ne.s32.totalorder %s372, %s375
    %p381 = scmp.eq.s32.totalorder %s22, 0
    %p382 = por %p380, %p381
    %p383 = scmp.ne.s32.totalorder %s372, %s375
    %p384 = scmp.eq.s32.totalorder %s27, 3
    %p385 = por %p383, %p384
    %p386 = scmp.ne.s32.totalorder %s375, %s376
    %p387 = scmp.eq.s32.totalorder %s27, 0
    %p388 = por %p386, %p387
    %p389 = scmp.ne.s32.totalorder %s375, %s376
    %p390 = scmp.eq.s32.totalorder %s28, 3
    %p391 = por %p389, %p390
    %p393 = scmp.ne.s32.totalorder %s376, %s392
    %p394 = scmp.eq.s32.totalorder %s28, 0
    %p395 = por %p393, %p394
    %s396 = ssub.s32 %s30, %s37
    %p397 = scmp.eq.s32.totalorder %s396, 0
    %s399 = sadd.s32 %s398, 1
    %s400 = scalar_select %p397, %s398, %s399
    %p403 = pneg %p397
    %p404 = scmp.eq.s32.totalorder %s22, 3
    %p405 = por %p403, %p404
    %p406 = scmp.ne.s32.totalorder %s398, %s401
    %p407 = scmp.eq.s32.totalorder %s22, 0
    %p408 = por %p406, %p407
    %p409 = scmp.ne.s32.totalorder %s398, %s401
    %p410 = scmp.eq.s32.totalorder %s27, 3
    %p411 = por %p409, %p410
    %p412 = scmp.ne.s32.totalorder %s401, %s402
    %p413 = scmp.eq.s32.totalorder %s27, 0
    %p414 = por %p412, %p413
    %p415 = scmp.ne.s32.totalorder %s401, %s402
    %p416 = scmp.eq.s32.totalorder %s28, 3
    %p417 = por %p415, %p416
    %p419 = scmp.ne.s32.totalorder %s402, %s418
    %p420 = scmp.eq.s32.totalorder %s28, 0
    %p421 = por %p419, %p420
    %s422 = ssub.s32 %s30, %s37
    %p423 = scmp.eq.s32.totalorder %s422, 0
    %s425 = sadd.s32 %s424, 1
    %s426 = scalar_select %p423, %s424, %s425
    %p429 = pneg %p423
    %p430 = scmp.eq.s32.totalorder %s22, 3
    %p431 = por %p429, %p430
    %p432 = scmp.ne.s32.totalorder %s424, %s427
    %p433 = scmp.eq.s32.totalorder %s22, 0
    %p434 = por %p432, %p433
    %p435 = scmp.ne.s32.totalorder %s424, %s427
    %p436 = scmp.eq.s32.totalorder %s27, 3
    %p437 = por %p435, %p436
    %p438 = scmp.ne.s32.totalorder %s427, %s428
    %p439 = scmp.eq.s32.totalorder %s27, 0
    %p440 = por %p438, %p439
    %p441 = scmp.ne.s32.totalorder %s427, %s428
    %p442 = scmp.eq.s32.totalorder %s28, 3
    %p443 = por %p441, %p442
    %p445 = scmp.ne.s32.totalorder %s428, %s444
    %p446 = scmp.eq.s32.totalorder %s28, 0
    %p447 = por %p445, %p446
    %s448 = ssub.s32 %s29, %s41
    %p449 = scmp.eq.s32.totalorder %s448, 0
    %s451 = sadd.s32 %s450, 1
    %s452 = scalar_select %p449, %s450, %s451
    %p455 = pneg %p449
    %p456 = scmp.eq.s32.totalorder %s22, 3
    %p457 = por %p455, %p456
    %p458 = scmp.ne.s32.totalorder %s450, %s453
    %p459 = scmp.eq.s32.totalorder %s22, 0
    %p460 = por %p458, %p459
    %p461 = scmp.ne.s32.totalorder %s450, %s453
    %p462 = scmp.eq.s32.totalorder %s27, 3
    %p463 = por %p461, %p462
    %p464 = scmp.ne.s32.totalorder %s453, %s454
    %p465 = scmp.eq.s32.totalorder %s27, 0
    %p466 = por %p464, %p465
    %p467 = scmp.ne.s32.totalorder %s453, %s454
    %p468 = scmp.eq.s32.totalorder %s28, 3
    %p469 = por %p467, %p468
    %p471 = scmp.ne.s32.totalorder %s454, %s470
    %p472 = scmp.eq.s32.totalorder %s28, 0
    %p473 = por %p471, %p472
    %p474 = scmp.le.s32.totalorder 1, %s22
    %p475 = scmp.lt.s32.totalorder %s22, 5
    %p476 = pnand %p474, %p475
    %p477 = pneg %p476
    // Predicated region
    $region9: #{emotion_classifier_forward.2} parent=5 // pred_check
      _
    $region10: #{emotion_classifier_forward.2} parent=5 // pred_check_branch
      %479 = sbr.rel (%p476) target = $region12
    $region11: #{emotion_classifier_forward.2} parent=5 // pred_region
      %s480 = ssub.s32 %s22, 1
      // Predicated region
      $region13: #{emotion_classifier_forward.2} parent=11 // pred_check
        %p481 = pneg %p107
      $region14: #{emotion_classifier_forward.2} parent=11 // pred_check_branch
        %483 = sbr.rel (%p481) target = $region16
      $region15: #{emotion_classifier_forward.2} parent=11 // pred_region
        _
      $region16: #{emotion_classifier_forward.2} parent=11 // pred_fallthru
        _
      // Predicated region
      $region17: #{emotion_classifier_forward.2} parent=11 // pred_check
        %p484 = pneg %p128
      $region18: #{emotion_classifier_forward.2} parent=11 // pred_check_branch
        %486 = sbr.rel (%p484) target = $region20
      $region19: #{emotion_classifier_forward.2} parent=11 // pred_region
        _
      $region20: #{emotion_classifier_forward.2} parent=11 // pred_fallthru
        _
    $region12: #{emotion_classifier_forward.2} parent=5 // pred_fallthru
      _
    %p487 = scmp.lt.s32.totalorder %s22, 4
    // Predicated region
    $region21: #{emotion_classifier_forward.2} parent=5 // pred_check
      %p488 = pneg %p487
    $region22: #{emotion_classifier_forward.2} parent=5 // pred_check_branch
      %490 = sbr.rel (%p488) target = $region24
    $region23: #{emotion_classifier_forward.2} parent=5 // pred_region
      // Predicated region
      $region25: #{emotion_classifier_forward.2} parent=23 // pred_check
        %p491 = pneg %p54
      $region26: #{emotion_classifier_forward.2} parent=23 // pred_check_branch
        %493 = sbr.rel (%p491) target = $region28
      $region27: #{emotion_classifier_forward.2} parent=23 // pred_region
        %p494 = scmp.lt.s32.totalorder %s29, 1
        %s495 = scalar_select %p494, %s29, 1
        %s496 = smul.addr %s495, 4
        %s497 = scalar_lea.vmem %s0, %s496
      $region28: #{emotion_classifier_forward.2} parent=23 // pred_fallthru
        _
      // Predicated region
      $region29: #{emotion_classifier_forward.2} parent=23 // pred_check
        %p498 = pneg %p80
      $region30: #{emotion_classifier_forward.2} parent=23 // pred_check_branch
        %500 = sbr.rel (%p498) target = $region32
      $region31: #{emotion_classifier_forward.2} parent=23 // pred_region
        %p501 = scmp.lt.s32.totalorder %s29, 1
        %s502 = scalar_select %p501, %s29, 1
        %s503 = scalar_lea.vmem %s1, %s502
      $region32: #{emotion_classifier_forward.2} parent=23 // pred_fallthru
        _
      // Predicated region
      $region33: #{emotion_classifier_forward.2} parent=23 // pred_check
        %p504 = pneg %p148
      $region34: #{emotion_classifier_forward.2} parent=23 // pred_check_branch
        %506 = sbr.rel (%p504) target = $region36
      $region35: #{emotion_classifier_forward.2} parent=23 // pred_region
        %p507 = scmp.lt.s32.totalorder %s30, 1
        %s508 = scalar_select %p507, %s30, 1
        %s509 = smul.addr %s508, 4
        %s510 = smul.addr %s509, 4
        %s511 = scalar_lea.vmem %s4, %s510
      $region36: #{emotion_classifier_forward.2} parent=23 // pred_fallthru
        _
      // Predicated region
      $region37: #{emotion_classifier_forward.2} parent=23 // pred_check
        %p512 = pneg %p174
      $region38: #{emotion_classifier_forward.2} parent=23 // pred_check_branch
        %514 = sbr.rel (%p512) target = $region40
      $region39: #{emotion_classifier_forward.2} parent=23 // pred_region
        %p515 = scmp.lt.s32.totalorder %s30, 1
        %s516 = scalar_select %p515, %s30, 1
        %s517 = scalar_lea.vmem %s5, %s516
      $region40: #{emotion_classifier_forward.2} parent=23 // pred_fallthru
        _
      // Predicated region
      $region41: #{emotion_classifier_forward.2} parent=23 // pred_check
        %p518 = pneg %p200
      $region42: #{emotion_classifier_forward.2} parent=23 // pred_check_branch
        %520 = sbr.rel (%p518) target = $region44
      $region43: #{emotion_classifier_forward.2} parent=23 // pred_region
        %p521 = scmp.lt.s32.totalorder %s30, 1
        %s522 = scalar_select %p521, %s30, 1
        %s523 = smul.addr %s522, 4
        %s524 = smul.addr %s523, 4
        %s525 = scalar_lea.vmem %s6, %s524
      $region44: #{emotion_classifier_forward.2} parent=23 // pred_fallthru
        _
      // Predicated region
      $region45: #{emotion_classifier_forward.2} parent=23 // pred_check
        %p526 = pneg %p226
      $region46: #{emotion_classifier_forward.2} parent=23 // pred_check_branch
        %528 = sbr.rel (%p526) target = $region48
      $region47: #{emotion_classifier_forward.2} parent=23 // pred_region
        %p529 = scmp.lt.s32.totalorder %s30, 1
        %s530 = scalar_select %p529, %s30, 1
        %s531 = scalar_lea.vmem %s7, %s530
      $region48: #{emotion_classifier_forward.2} parent=23 // pred_fallthru
        _
      // Predicated region
      $region49: #{emotion_classifier_forward.2} parent=23 // pred_check
        %p532 = pneg %p252
      $region50: #{emotion_classifier_forward.2} parent=23 // pred_check_branch
        %534 = sbr.rel (%p532) target = $region52
      $region51: #{emotion_classifier_forward.2} parent=23 // pred_region
        %p535 = scmp.lt.s32.totalorder %s30, 1
        %s536 = scalar_select %p535, %s30, 1
        %s537 = scalar_lea.vmem %s8, %s536
      $region52: #{emotion_classifier_forward.2} parent=23 // pred_fallthru
        _
      // Predicated region
      $region53: #{emotion_classifier_forward.2} parent=23 // pred_check
        %p538 = pneg %p278
      $region54: #{emotion_classifier_forward.2} parent=23 // pred_check_branch
        %540 = sbr.rel (%p538) target = $region56
      $region55: #{emotion_classifier_forward.2} parent=23 // pred_region
        %p541 = scmp.lt.s32.totalorder %s30, 1
        %s542 = scalar_select %p541, %s30, 1
        %s543 = scalar_lea.vmem %s9, %s542
      $region56: #{emotion_classifier_forward.2} parent=23 // pred_fallthru
        _
      // Predicated region
      $region57: #{emotion_classifier_forward.2} parent=23 // pred_check
        %p544 = pneg %p304
      $region58: #{emotion_classifier_forward.2} parent=23 // pred_check_branch
        %546 = sbr.rel (%p544) target = $region60
      $region59: #{emotion_classifier_forward.2} parent=23 // pred_region
        %p547 = scmp.lt.s32.totalorder %s30, 1
        %s548 = scalar_select %p547, %s30, 1
        %s549 = smul.addr %s548, 4
        %s550 = smul.addr %s549, 4
        %s551 = scalar_lea.vmem %s10, %s550
      $region60: #{emotion_classifier_forward.2} parent=23 // pred_fallthru
        _
      // Predicated region
      $region61: #{emotion_classifier_forward.2} parent=23 // pred_check
        %p552 = pneg %p330
      $region62: #{emotion_classifier_forward.2} parent=23 // pred_check_branch
        %554 = sbr.rel (%p552) target = $region64
      $region63: #{emotion_classifier_forward.2} parent=23 // pred_region
        %p555 = scmp.lt.s32.totalorder %s30, 1
        %s556 = scalar_select %p555, %s30, 1
        %s557 = scalar_lea.vmem %s11, %s556
      $region64: #{emotion_classifier_forward.2} parent=23 // pred_fallthru
        _
      // Predicated region
      $region65: #{emotion_classifier_forward.2} parent=23 // pred_check
        %p558 = pneg %p356
      $region66: #{emotion_classifier_forward.2} parent=23 // pred_check_branch
        %560 = sbr.rel (%p558) target = $region68
      $region67: #{emotion_classifier_forward.2} parent=23 // pred_region
        %p561 = scmp.lt.s32.totalorder %s30, 1
        %s562 = scalar_select %p561, %s30, 1
        %s563 = smul.addr %s562, 8
        %s564 = smul.addr %s563, 4
        %s565 = scalar_lea.vmem %s12, %s564
      $region68: #{emotion_classifier_forward.2} parent=23 // pred_fallthru
        _
      // Predicated region
      $region69: #{emotion_classifier_forward.2} parent=23 // pred_check
        %p566 = pneg %p382
      $region70: #{emotion_classifier_forward.2} parent=23 // pred_check_branch
        %568 = sbr.rel (%p566) target = $region72
      $region71: #{emotion_classifier_forward.2} parent=23 // pred_region
        %p569 = scmp.lt.s32.totalorder %s30, 1
        %s570 = scalar_select %p569, %s30, 1
        %s571 = scalar_lea.vmem %s13, %s570
      $region72: #{emotion_classifier_forward.2} parent=23 // pred_fallthru
        _
      // Predicated region
      $region73: #{emotion_classifier_forward.2} parent=23 // pred_check
        %p572 = pneg %p408
      $region74: #{emotion_classifier_forward.2} parent=23 // pred_check_branch
        %574 = sbr.rel (%p572) target = $region76
      $region75: #{emotion_classifier_forward.2} parent=23 // pred_region
        %p575 = scmp.lt.s32.totalorder %s30, 1
        %s576 = scalar_select %p575, %s30, 1
        %s577 = scalar_lea.vmem %s14, %s576
      $region76: #{emotion_classifier_forward.2} parent=23 // pred_fallthru
        _
      // Predicated region
      $region77: #{emotion_classifier_forward.2} parent=23 // pred_check
        %p578 = pneg %p434
      $region78: #{emotion_classifier_forward.2} parent=23 // pred_check_branch
        %580 = sbr.rel (%p578) target = $region80
      $region79: #{emotion_classifier_forward.2} parent=23 // pred_region
        %p581 = scmp.lt.s32.totalorder %s30, 1
        %s582 = scalar_select %p581, %s30, 1
        %s583 = scalar_lea.vmem %s15, %s582
      $region80: #{emotion_classifier_forward.2} parent=23 // pred_fallthru
        _
    $region24: #{emotion_classifier_forward.2} parent=5 // pred_fallthru
      _
    %p584 = scmp.le.s32.totalorder 1, %s22
    %p585 = scmp.lt.s32.totalorder %s22, 5
    %p586 = pnand %p584, %p585
    %p587 = pneg %p586
    // Predicated region
    $region81: #{emotion_classifier_forward.2} parent=5 // pred_check
      _
    $region82: #{emotion_classifier_forward.2} parent=5 // pred_check_branch
      %589 = sbr.rel (%p586) target = $region84
    $region83: #{emotion_classifier_forward.2} parent=5 // pred_region
      %s590 = ssub.s32 %s22, 1
      %p591 = scmp.lt.s32.totalorder %s31, 1
      %s592 = scalar_select %p591, %s31, 1
      %s593 = smul.addr %s592, 4
      %s594 = scalar_lea.vmem %s0, %s593
      %p595 = pneg %p60
      %p596 = pneg %p57
      %p597 = scmp.lt.s32.totalorder %s31, 1
      %s598 = scalar_select %p597, %s31, 1
      %s599 = scalar_lea.vmem %s1, %s598
      %p600 = pneg %p86
      %p601 = pneg %p83
      %p602 = pneg %p107
      %p603 = pneg %p104
      %p604 = pneg %p128
      %p605 = pneg %p125
      %p606 = scmp.lt.s32.totalorder %s32, 1
      %s607 = scalar_select %p606, %s32, 1
      %s608 = smul.addr %s607, 4
      %s609 = smul.addr %s608, 4
      %s610 = scalar_lea.vmem %s4, %s609
      %p611 = pneg %p154
      %p612 = pneg %p151
      %p613 = scmp.lt.s32.totalorder %s32, 1
      %s614 = scalar_select %p613, %s32, 1
      %s615 = scalar_lea.vmem %s5, %s614
      %p616 = pneg %p180
      %p617 = pneg %p177
      %p618 = scmp.lt.s32.totalorder %s32, 1
      %s619 = scalar_select %p618, %s32, 1
      %s620 = smul.addr %s619, 4
      %s621 = smul.addr %s620, 4
      %s622 = scalar_lea.vmem %s6, %s621
      %p623 = pneg %p206
      %p624 = pneg %p203
      %p625 = scmp.lt.s32.totalorder %s32, 1
      %s626 = scalar_select %p625, %s32, 1
      %s627 = scalar_lea.vmem %s7, %s626
      %p628 = pneg %p232
      %p629 = pneg %p229
      %p630 = scmp.lt.s32.totalorder %s32, 1
      %s631 = scalar_select %p630, %s32, 1
      %s632 = scalar_lea.vmem %s8, %s631
      %p633 = pneg %p258
      %p634 = pneg %p255
      %p635 = scmp.lt.s32.totalorder %s32, 1
      %s636 = scalar_select %p635, %s32, 1
      %s637 = scalar_lea.vmem %s9, %s636
      %p638 = pneg %p284
      %p639 = pneg %p281
      %p640 = scmp.lt.s32.totalorder %s32, 1
      %s641 = scalar_select %p640, %s32, 1
      %s642 = smul.addr %s641, 4
      %s643 = smul.addr %s642, 4
      %s644 = scalar_lea.vmem %s10, %s643
      %p645 = pneg %p310
      %p646 = pneg %p307
      %p647 = scmp.lt.s32.totalorder %s32, 1
      %s648 = scalar_select %p647, %s32, 1
      %s649 = scalar_lea.vmem %s11, %s648
      %p650 = pneg %p336
      %p651 = pneg %p333
      %p652 = scmp.lt.s32.totalorder %s32, 1
      %s653 = scalar_select %p652, %s32, 1
      %s654 = smul.addr %s653, 8
      %s655 = smul.addr %s654, 4
      %s656 = scalar_lea.vmem %s12, %s655
      %p657 = pneg %p362
      %p658 = pneg %p359
      %p659 = scmp.lt.s32.totalorder %s32, 1
      %s660 = scalar_select %p659, %s32, 1
      %s661 = scalar_lea.vmem %s13, %s660
      %p662 = pneg %p388
      %p663 = pneg %p385
      %p664 = scmp.lt.s32.totalorder %s32, 1
      %s665 = scalar_select %p664, %s32, 1
      %s666 = scalar_lea.vmem %s14, %s665
      %p667 = pneg %p414
      %p668 = pneg %p411
      %p669 = scmp.lt.s32.totalorder %s32, 1
      %s670 = scalar_select %p669, %s32, 1
      %s671 = scalar_lea.vmem %s15, %s670
      %p672 = pneg %p440
      %p673 = pneg %p437
      %p674 = pneg %p466
      %p675 = pneg %p463
      %p676 = scmp.lt.s32.totalorder %s31, 1
      %s677 = scalar_select %p676, %s31, 1
      %s678 = scalar_lea.vmem %s16, %s677
      %p679 = scmp.lt.s32.totalorder %s31, 1
      %s680 = scalar_select %p679, %s31, 1
      %s681 = smul.addr %s680, 4
      %s682 = scalar_lea.vmem %s0, %s681
      %p683 = scmp.lt.s32.totalorder %s31, 1
      %s684 = scalar_select %p683, %s31, 1
      %s685 = scalar_lea.vmem %s1, %s684
      %p686 = scmp.lt.s32.totalorder %s32, 1
      %s687 = scalar_select %p686, %s32, 1
      %s688 = smul.addr %s687, 4
      %s689 = smul.addr %s688, 4
      %s690 = scalar_lea.vmem %s4, %s689
      %p691 = scmp.lt.s32.totalorder %s32, 1
      %s692 = scalar_select %p691, %s32, 1
      %s693 = scalar_lea.vmem %s5, %s692
      %p694 = scmp.lt.s32.totalorder %s32, 1
      %s695 = scalar_select %p694, %s32, 1
      %s696 = smul.addr %s695, 4
      %s697 = smul.addr %s696, 4
      %s698 = scalar_lea.vmem %s6, %s697
      %p699 = scmp.lt.s32.totalorder %s32, 1
      %s700 = scalar_select %p699, %s32, 1
      %s701 = scalar_lea.vmem %s7, %s700
      %p702 = scmp.lt.s32.totalorder %s32, 1
      %s703 = scalar_select %p702, %s32, 1
      %s704 = scalar_lea.vmem %s8, %s703
      %p705 = scmp.lt.s32.totalorder %s32, 1
      %s706 = scalar_select %p705, %s32, 1
      %s707 = scalar_lea.vmem %s9, %s706
      %p708 = scmp.lt.s32.totalorder %s32, 1
      %s709 = scalar_select %p708, %s32, 1
      %s710 = smul.addr %s709, 4
      %s711 = smul.addr %s710, 4
      %s712 = scalar_lea.vmem %s10, %s711
      %p713 = scmp.lt.s32.totalorder %s32, 1
      %s714 = scalar_select %p713, %s32, 1
      %s715 = scalar_lea.vmem %s11, %s714
      %p716 = scmp.lt.s32.totalorder %s32, 1
      %s717 = scalar_select %p716, %s32, 1
      %s718 = smul.addr %s717, 8
      %s719 = smul.addr %s718, 4
      %s720 = scalar_lea.vmem %s12, %s719
      %p721 = scmp.lt.s32.totalorder %s32, 1
      %s722 = scalar_select %p721, %s32, 1
      %s723 = scalar_lea.vmem %s13, %s722
      %p724 = scmp.lt.s32.totalorder %s32, 1
      %s725 = scalar_select %p724, %s32, 1
      %s726 = scalar_lea.vmem %s14, %s725
      %p727 = scmp.lt.s32.totalorder %s32, 1
      %s728 = scalar_select %p727, %s32, 1
      %s729 = scalar_lea.vmem %s15, %s728
      %p730 = scmp.lt.s32.totalorder %s31, 1
      %s731 = scalar_select %p730, %s31, 1
      %s732 = scalar_lea.vmem %s16, %s731
      %p734 = scmp.eq.s32.totalorder %s32, 0
      // Predicated region
      $region85: #{emotion_classifier_forward.2} parent=83 // pred_check
        %p735 = pneg %p734
      $region86: #{emotion_classifier_forward.2} parent=83 // pred_check_branch
        %737 = sbr.rel (%p735) target = $region88
      $region87: #{emotion_classifier_forward.2} parent=83 // pred_region
        %v738 = vld [vmem:[%s682] sm:$0xf]
        %v739 = vunpack.c.l.bf16 %v738
        %v740 = vld [vmem:[%s2] sm:$0x1]
        %v741 = vld [vmem:[%s3] sm:$0x1]
        %vm742 = vcmask 261120
        %v743 = vsel %vm742, %v739, 0.0
        %744 = vadd.xlane.f32.xlu0 %v743
        %v745 = vpop.xlane.xlu0 %744
        %v746 = vrcp.pop 32.0
        %v747 = vmul.f32 %v745, %v746
        %v748 = vsub.f32 %v739, %v747
        %v749 = vmul.f32 %v748, %v748
        %v750 = vsel %vm742, %v749, 0.0
        %751 = vadd.xlane.f32.xlu0 %v750
        %v752 = vpop.xlane.xlu0 %751
        %v753 = vmul.f32 %v752, %v746
        %v754 = vadd.f32 %v753, 1e-12
        %v755 = vrsqrt.pop %v754
        %v756 = vmul.f32 %v748, %v755
        %v758 = vlaneseq
        %v759 = vshrl.u32 %v758, 7
        %v760 = vsub.s32 0, %v759
        %v761 = vrot.slane %v740, %v760
        %v763 = vmul.f32 %v756, %v761
        %v765 = vlaneseq
        %v766 = vshrl.u32 %v765, 7
        %v767 = vsub.s32 0, %v766
        %v768 = vrot.slane %v741, %v767
        %v770 = vadd.f32 %v763, %v768
        %771 = vst.msk [vmem:[#allocation2] sm:$0xff] %vm742, %v770
      $region88: #{emotion_classifier_forward.2} parent=83 // pred_fallthru
        _
      %v772 = vld [vmem:[#allocation2] sm:$0xff]
      %v773 = vld [vmem:[%s690] sm:$0xf]
      %v774 = vld [vmem:[%s690 + $0x4] sm:$0xf]
      %v775 = vld [vmem:[%s690 + $0x8] sm:$0xf]
      %v776 = vld [vmem:[%s690 + $0xc] sm:$0xf]
      %v777 = vpack.c.bf16 %v772, %v772
      %v778 = vld [vmem:[%s693] sm:$0x1]
      %v780 = vlaneseq
      %v781 = vshrl.u32 %v780, 7
      %v782 = vsub.s32 0, %v781
      %v783 = vrot.slane %v778, %v782
      %v789 = vunpack.c.l.b16 %v773
      %v790 = vunpack.c.l.b16 %v774
      %v791 = vunpack.c.l.b16 %v775
      %v792 = vunpack.c.l.b16 %v776
      %v793 = vpack.c.b16 %v790, %v789
      %v794 = vpack.c.b16 %v792, %v791
      %vm797 = vcmask 261120
      %v799 = vsel %vm797, %v777, 0
      %801 = vmatprep.subr.bf16.mxu0 0
      %802 = vmatpush1.bf16.msra.mxu0 0
      %803 = vmatprep.subr.bf16.mxu0 0
      %804 = vmatpush1.bf16.msra.mxu0 0
      %805 = vmatprep.subr.bf16.mxu0 0
      %806 = vmatpush1.bf16.msra.mxu0 0
      %807 = vmatprep.subr.bf16.mxu0 0
      %808 = vmatpush1.bf16.msra.mxu0 0
      %809 = vmatprep.subr.bf16.mxu0 0
      %810 = vmatpush1.bf16.msra.mxu0 0
      %811 = vmatprep.subr.bf16.mxu0 0
      %812 = vmatpush1.bf16.msra.mxu0 0
      %813 = vmatprep.subr.bf16.mxu0 0
      %814 = vmatpush1.bf16.msra.mxu0 %v794
      %815 = vmatprep.subr.bf16.mxu0 0
      %816 = vmatpush1.bf16.msra.mxu0 %v793
      %817 = vmatprep.subr.bf16.mxu0 0
      %818 = vmatpush2.bf16.msra.mxu0 0
      %819 = vmatprep.subr.bf16.mxu0 0
      %820 = vmatpush2.bf16.msra.mxu0 0
      %821 = vmatprep.subr.bf16.mxu0 0
      %822 = vmatpush2.bf16.msra.mxu0 0
      %823 = vmatprep.subr.bf16.mxu0 0
      %824 = vmatpush2.bf16.msra.mxu0 0
      %825 = vmatprep.subr.bf16.mxu0 0
      %826 = vmatpush2.bf16.msra.mxu0 0
      %827 = vmatprep.subr.bf16.mxu0 0
      %828 = vmatpush2.bf16.msra.mxu0 0
      %829 = vmatprep.subr.bf16.mxu0 0
      %830 = vmatpush2.bf16.msra.mxu0 0
      %831 = vmatprep.subr.bf16.mxu0 0
      %832 = vmatpush2.bf16.msra.mxu0 0
      %833 = vmatprep.mubr.bf16.mxu0 0
      %834 = vmatmul.mubr.bf16.gmra.mxu0 %v799
      %v835 = vpop.f32.mrf.mxu0
      %v836 = vadd.f32 %v783, %v835
      %v837 = vpop.f32.mrf.mxu0
      %v838 = vpop.f32.mrf.mxu0
      %v839 = vpop.f32.mrf.mxu0
      %840 = vdwg.mxu0
      %v841 = vld [vmem:[%s685] sm:$0x1]
      %v842 = vpack.c.bf16 %v836, %v836
      %v844 = vlaneseq
      %v845 = vshrl.u32 %v844, 7
      %v846 = vsub.s32 0, %v845
      %v847 = vrot.slane %v841, %v846
      %850 = vrot.lane.b32.xlu0 %v842, 96
      %v851 = vpop.permute.xlu0 %850
      %vm852 = vcmask 130048
      %v854 = vsel %vm852, %v842, 0
      %v857 = vsel %vm852, %v851, 0
      %859 = vmatprep.subr.bf16.mxu0 0
      %860 = vmatpush1.bf16.xpose.msra.mxu0 0
      %861 = vmatprep.subr.bf16.mxu0 0
      %862 = vmatpush1.bf16.xpose.msra.mxu0 0
      %863 = vmatprep.subr.bf16.mxu0 0
      %864 = vmatpush1.bf16.xpose.msra.mxu0 0
      %865 = vmatprep.subr.bf16.mxu0 0
      %866 = vmatpush1.bf16.xpose.msra.mxu0 0
      %867 = vmatprep.subr.bf16.mxu0 0
      %868 = vmatpush1.bf16.xpose.msra.mxu0 0
      %869 = vmatprep.subr.bf16.mxu0 0
      %870 = vmatpush1.bf16.xpose.msra.mxu0 0
      %871 = vmatprep.subr.bf16.mxu0 0
      %872 = vmatpush1.bf16.xpose.msra.mxu0 0
      %873 = vmatprep.subr.bf16.mxu0 0
      %874 = vmatpush1.bf16.xpose.msra.mxu0 %v857
      %875 = vmatprep.subr.bf16.mxu0 0
      %876 = vmatpush2.bf16.xpose.msra.mxu0 0
      %877 = vmatprep.subr.bf16.mxu0 0
      %878 = vmatpush2.bf16.xpose.msra.mxu0 0
      %879 = vmatprep.subr.bf16.mxu0 0
      %880 = vmatpush2.bf16.xpose.msra.mxu0 0
      %881 = vmatprep.subr.bf16.mxu0 0
      %882 = vmatpush2.bf16.xpose.msra.mxu0 0
      %883 = vmatprep.subr.bf16.mxu0 0
      %884 = vmatpush2.bf16.xpose.msra.mxu0 0
      %885 = vmatprep.subr.bf16.mxu0 0
      %886 = vmatpush2.bf16.xpose.msra.mxu0 0
      %887 = vmatprep.subr.bf16.mxu0 0
      %888 = vmatpush2.bf16.xpose.msra.mxu0 0
      %889 = vmatprep.subr.bf16.mxu0 0
      %890 = vmatpush2.bf16.xpose.msra.mxu0 0
      %891 = vmatprep.mubr.bf16.mxu0 0
      %892 = vmatmul.mubr.bf16.gmra.mxu0 %v854
      %v893 = vpop.f32.mrf.mxu0
      %v894 = vadd.f32 %v847, %v893
      %v895 = vpop.f32.mrf.mxu0
      %v896 = vpop.f32.mrf.mxu0
      %v897 = vpop.f32.mrf.mxu0
      %898 = vdwg.mxu0
      %vm899 = vcmask 64512
      %v900 = vsel %vm899, %v894, -inf
      %901 = vmax.xlane.f32.xlu0 %v900
      %v902 = vpop.xlane.xlu0 %901
      %v903 = vsub.f32 %v894, %v902
      %v904 = vmul.f32 %v903, 1.442695
      %v905 = vpow.pop %v904
      %v906 = vsel %vm899, %v905, 0.0
      %907 = vadd.xlane.f32.xlu0 %v906
      %v908 = vpop.xlane.xlu0 %907
      %v909 = vrcp.pop %v908
      %v910 = vmul.f32 %v905, %v909
      %v911 = vpack.c.bf16 %v910, %v910
      %912 = vrot.lane.b32.xlu0 %v842, 64
      %v913 = vpop.permute.xlu0 %912
      %v915 = vsel %vm899, %v911, 0
      %vm917 = vcmask 1043456
      %v919 = vsel %vm917, %v913, 0
      %921 = vmatprep.subr.bf16.mxu0 0
      %922 = vmatpush1.bf16.msra.mxu0 0
      %923 = vmatprep.subr.bf16.mxu0 0
      %924 = vmatpush1.bf16.msra.mxu0 0
      %925 = vmatprep.subr.bf16.mxu0 0
      %926 = vmatpush1.bf16.msra.mxu0 0
      %927 = vmatprep.subr.bf16.mxu0 0
      %928 = vmatpush1.bf16.msra.mxu0 0
      %929 = vmatprep.subr.bf16.mxu0 0
      %930 = vmatpush1.bf16.msra.mxu0 0
      %931 = vmatprep.subr.bf16.mxu0 0
      %932 = vmatpush1.bf16.msra.mxu0 0
      %933 = vmatprep.subr.bf16.mxu0 0
      %934 = vmatpush1.bf16.msra.mxu0 0
      %935 = vmatprep.subr.bf16.mxu0 0
      %936 = vmatpush1.bf16.msra.mxu0 %v919
      %937 = vmatprep.subr.bf16.mxu0 0
      %938 = vmatpush2.bf16.msra.mxu0 0
      %939 = vmatprep.subr.bf16.mxu0 0
      %940 = vmatpush2.bf16.msra.mxu0 0
      %941 = vmatprep.subr.bf16.mxu0 0
      %942 = vmatpush2.bf16.msra.mxu0 0
      %943 = vmatprep.subr.bf16.mxu0 0
      %944 = vmatpush2.bf16.msra.mxu0 0
      %945 = vmatprep.subr.bf16.mxu0 0
      %946 = vmatpush2.bf16.msra.mxu0 0
      %947 = vmatprep.subr.bf16.mxu0 0
      %948 = vmatpush2.bf16.msra.mxu0 0
      %949 = vmatprep.subr.bf16.mxu0 0
      %950 = vmatpush2.bf16.msra.mxu0 0
      %951 = vmatprep.subr.bf16.mxu0 0
      %952 = vmatpush2.bf16.msra.mxu0 0
      %953 = vmatprep.mubr.bf16.mxu0 0
      %954 = vmatmul.mubr.bf16.gmra.mxu0 %v915
      %v955 = vpop.f32.mrf.mxu0
      %v956 = vadd.f32 0.0, %v955
      %v957 = vpop.f32.mrf.mxu0
      %v958 = vpop.f32.mrf.mxu0
      %v959 = vpop.f32.mrf.mxu0
      %960 = vdwg.mxu0
      %v961 = vpack.c.bf16 %v956, %v956
      %vm962 = vcmask 125952
      %963 = vst.msk [vmem:[#allocation3] sm:$0xf] %vm962, %v961
      %964 = vrot.lane.b32.xlu0 %v842, 112
      %v965 = vpop.permute.xlu0 %964
      %966 = vrot.lane.b32.xlu0 %v842, 80
      %v967 = vpop.permute.xlu0 %966
      %v969 = vsel %vm852, %v965, 0
      %v972 = vsel %vm852, %v967, 0
      %974 = vmatprep.subr.bf16.mxu0 0
      %975 = vmatpush1.bf16.xpose.msra.mxu0 0
      %976 = vmatprep.subr.bf16.mxu0 0
      %977 = vmatpush1.bf16.xpose.msra.mxu0 0
      %978 = vmatprep.subr.bf16.mxu0 0
      %979 = vmatpush1.bf16.xpose.msra.mxu0 0
      %980 = vmatprep.subr.bf16.mxu0 0
      %981 = vmatpush1.bf16.xpose.msra.mxu0 0
      %982 = vmatprep.subr.bf16.mxu0 0
      %983 = vmatpush1.bf16.xpose.msra.mxu0 0
      %984 = vmatprep.subr.bf16.mxu0 0
      %985 = vmatpush1.bf16.xpose.msra.mxu0 0
      %986 = vmatprep.subr.bf16.mxu0 0
      %987 = vmatpush1.bf16.xpose.msra.mxu0 0
      %988 = vmatprep.subr.bf16.mxu0 0
      %989 = vmatpush1.bf16.xpose.msra.mxu0 %v972
      %990 = vmatprep.subr.bf16.mxu0 0
      %991 = vmatpush2.bf16.xpose.msra.mxu0 0
      %992 = vmatprep.subr.bf16.mxu0 0
      %993 = vmatpush2.bf16.xpose.msra.mxu0 0
      %994 = vmatprep.subr.bf16.mxu0 0
      %995 = vmatpush2.bf16.xpose.msra.mxu0 0
      %996 = vmatprep.subr.bf16.mxu0 0
      %997 = vmatpush2.bf16.xpose.msra.mxu0 0
      %998 = vmatprep.subr.bf16.mxu0 0
      %999 = vmatpush2.bf16.xpose.msra.mxu0 0
      %1000 = vmatprep.subr.bf16.mxu0 0
      %1001 = vmatpush2.bf16.xpose.msra.mxu0 0
      %1002 = vmatprep.subr.bf16.mxu0 0
      %1003 = vmatpush2.bf16.xpose.msra.mxu0 0
      %1004 = vmatprep.subr.bf16.mxu0 0
      %1005 = vmatpush2.bf16.xpose.msra.mxu0 0
      %1006 = vmatprep.mubr.bf16.mxu0 0
      %1007 = vmatmul.mubr.bf16.gmra.mxu0 %v969
      %v1008 = vpop.f32.mrf.mxu0
      %v1009 = vadd.f32 %v847, %v1008
      %v1010 = vpop.f32.mrf.mxu0
      %v1011 = vpop.f32.mrf.mxu0
      %v1012 = vpop.f32.mrf.mxu0
      %1013 = vdwg.mxu0
      %v1014 = vsel %vm899, %v1009, -inf
      %1015 = vmax.xlane.f32.xlu0 %v1014
      %v1016 = vpop.xlane.xlu0 %1015
      %v1017 = vsub.f32 %v1009, %v1016
      %v1018 = vmul.f32 %v1017, 1.442695
      %v1019 = vpow.pop %v1018
      %v1020 = vsel %vm899, %v1019, 0.0
      %1021 = vadd.xlane.f32.xlu0 %v1020
      %v1022 = vpop.xlane.xlu0 %1021
      %v1023 = vrcp.pop %v1022
      %v1024 = vmul.f32 %v1019, %v1023
      %v1025 = vpack.c.bf16 %v1024, %v1024
      %1026 = vrot.lane.b32.xlu0 %v842, 48
      %v1027 = vpop.permute.xlu0 %1026
      %v1029 = vsel %vm899, %v1025, 0
      %v1032 = vsel %vm917, %v1027, 0
      %1034 = vmatprep.subr.bf16.mxu0 0
      %1035 = vmatpush1.bf16.msra.mxu0 0
      %1036 = vmatprep.subr.bf16.mxu0 0
      %1037 = vmatpush1.bf16.msra.mxu0 0
      %1038 = vmatprep.subr.bf16.mxu0 0
      %1039 = vmatpush1.bf16.msra.mxu0 0
      %1040 = vmatprep.subr.bf16.mxu0 0
      %1041 = vmatpush1.bf16.msra.mxu0 0
      %1042 = vmatprep.subr.bf16.mxu0 0
      %1043 = vmatpush1.bf16.msra.mxu0 0
      %1044 = vmatprep.subr.bf16.mxu0 0
      %1045 = vmatpush1.bf16.msra.mxu0 0
      %1046 = vmatprep.subr.bf16.mxu0 0
      %1047 = vmatpush1.bf16.msra.mxu0 0
      %1048 = vmatprep.subr.bf16.mxu0 0
      %1049 = vmatpush1.bf16.msra.mxu0 %v1032
      %1050 = vmatprep.subr.bf16.mxu0 0
      %1051 = vmatpush2.bf16.msra.mxu0 0
      %1052 = vmatprep.subr.bf16.mxu0 0
      %1053 = vmatpush2.bf16.msra.mxu0 0
      %1054 = vmatprep.subr.bf16.mxu0 0
      %1055 = vmatpush2.bf16.msra.mxu0 0
      %1056 = vmatprep.subr.bf16.mxu0 0
      %1057 = vmatpush2.bf16.msra.mxu0 0
      %1058 = vmatprep.subr.bf16.mxu0 0
      %1059 = vmatpush2.bf16.msra.mxu0 0
      %1060 = vmatprep.subr.bf16.mxu0 0
      %1061 = vmatpush2.bf16.msra.mxu0 0
      %1062 = vmatprep.subr.bf16.mxu0 0
      %1063 = vmatpush2.bf16.msra.mxu0 0
      %1064 = vmatprep.subr.bf16.mxu0 0
      %1065 = vmatpush2.bf16.msra.mxu0 0
      %1066 = vmatprep.mubr.bf16.mxu0 0
      %1067 = vmatmul.mubr.bf16.gmra.mxu0 %v1029
      %v1068 = vpop.f32.mrf.mxu0
      %v1069 = vadd.f32 0.0, %v1068
      %v1070 = vpop.f32.mrf.mxu0
      %v1071 = vpop.f32.mrf.mxu0
      %v1072 = vpop.f32.mrf.mxu0
      %1073 = vdwg.mxu0
      %v1074 = vpack.c.bf16 %v1069, %v1069
      %v1076 = vunpack.c.l.b16 %v1074
      %v1077 = vpack.c.b16 %v1076, %v1076
      %1078 = vrot.lane.b32.xlu0 %v1077, 16
      %v1079 = vpop.permute.xlu0 %1078
      %vm1081 = vcmask 257152
      %1082 = vst.msk [vmem:[#allocation3] sm:$0xf] %vm1081, %v1079
      %v1083 = vld [vmem:[#allocation3] sm:$0xf]
      %v1084 = vld [vmem:[%s698] sm:$0xf]
      %v1085 = vld [vmem:[%s698 + $0x4] sm:$0xf]
      %v1086 = vld [vmem:[%s698 + $0x8] sm:$0xf]
      %v1087 = vld [vmem:[%s698 + $0xc] sm:$0xf]
      %v1088 = vld [vmem:[%s701] sm:$0x1]
      %v1090 = vlaneseq
      %v1091 = vshrl.u32 %v1090, 7
      %v1092 = vsub.s32 0, %v1091
      %v1093 = vrot.slane %v1088, %v1092
      %v1099 = vunpack.c.l.b16 %v1084
      %v1100 = vunpack.c.l.b16 %v1085
      %v1101 = vunpack.c.l.b16 %v1086
      %v1102 = vunpack.c.l.b16 %v1087
      %v1103 = vpack.c.b16 %v1100, %v1099
      %v1104 = vpack.c.b16 %v1102, %v1101
      %v1108 = vsel %vm797, %v1083, 0
      %1110 = vmatprep.subr.bf16.mxu0 0
      %1111 = vmatpush1.bf16.msra.mxu0 0
      %1112 = vmatprep.subr.bf16.mxu0 0
      %1113 = vmatpush1.bf16.msra.mxu0 0
      %1114 = vmatprep.subr.bf16.mxu0 0
      %1115 = vmatpush1.bf16.msra.mxu0 0
      %1116 = vmatprep.subr.bf16.mxu0 0
      %1117 = vmatpush1.bf16.msra.mxu0 0
      %1118 = vmatprep.subr.bf16.mxu0 0
      %1119 = vmatpush1.bf16.msra.mxu0 0
      %1120 = vmatprep.subr.bf16.mxu0 0
      %1121 = vmatpush1.bf16.msra.mxu0 0
      %1122 = vmatprep.subr.bf16.mxu0 0
      %1123 = vmatpush1.bf16.msra.mxu0 %v1104
      %1124 = vmatprep.subr.bf16.mxu0 0
      %1125 = vmatpush1.bf16.msra.mxu0 %v1103
      %1126 = vmatprep.subr.bf16.mxu0 0
      %1127 = vmatpush2.bf16.msra.mxu0 0
      %1128 = vmatprep.subr.bf16.mxu0 0
      %1129 = vmatpush2.bf16.msra.mxu0 0
      %1130 = vmatprep.subr.bf16.mxu0 0
      %1131 = vmatpush2.bf16.msra.mxu0 0
      %1132 = vmatprep.subr.bf16.mxu0 0
      %1133 = vmatpush2.bf16.msra.mxu0 0
      %1134 = vmatprep.subr.bf16.mxu0 0
      %1135 = vmatpush2.bf16.msra.mxu0 0
      %1136 = vmatprep.subr.bf16.mxu0 0
      %1137 = vmatpush2.bf16.msra.mxu0 0
      %1138 = vmatprep.subr.bf16.mxu0 0
      %1139 = vmatpush2.bf16.msra.mxu0 0
      %1140 = vmatprep.subr.bf16.mxu0 0
      %1141 = vmatpush2.bf16.msra.mxu0 0
      %1142 = vmatprep.mubr.bf16.mxu0 0
      %1143 = vmatmul.mubr.bf16.gmra.mxu0 %v1108
      %v1144 = vpop.f32.mrf.mxu0
      %v1145 = vadd.f32 %v1093, %v1144
      %v1146 = vpop.f32.mrf.mxu0
      %v1147 = vpop.f32.mrf.mxu0
      %v1148 = vpop.f32.mrf.mxu0
      %1149 = vdwg.mxu0
      %v1150 = vadd.f32 %v1145, %v772
      %v1151 = vld [vmem:[%s704] sm:$0x1]
      %v1152 = vld [vmem:[%s707] sm:$0x1]
      %v1153 = vsel %vm797, %v1150, 0.0
      %1154 = vadd.xlane.f32.xlu0 %v1153
      %v1155 = vpop.xlane.xlu0 %1154
      %v1156 = vrcp.pop 32.0
      %v1157 = vmul.f32 %v1155, %v1156
      %v1158 = vsub.f32 %v1150, %v1157
      %v1159 = vmul.f32 %v1158, %v1158
      %v1160 = vsel %vm797, %v1159, 0.0
      %1161 = vadd.xlane.f32.xlu0 %v1160
      %v1162 = vpop.xlane.xlu0 %1161
      %v1163 = vmul.f32 %v1162, %v1156
      %v1164 = vadd.f32 %v1163, 1e-12
      %v1165 = vrsqrt.pop %v1164
      %v1166 = vmul.f32 %v1158, %v1165
      %v1168 = vlaneseq
      %v1169 = vshrl.u32 %v1168, 7
      %v1170 = vsub.s32 0, %v1169
      %v1171 = vrot.slane %v1151, %v1170
      %v1173 = vmul.f32 %v1166, %v1171
      %v1175 = vlaneseq
      %v1176 = vshrl.u32 %v1175, 7
      %v1177 = vsub.s32 0, %v1176
      %v1178 = vrot.slane %v1152, %v1177
      %v1180 = vadd.f32 %v1173, %v1178
      %v1181 = vld [vmem:[%s712] sm:$0xf]
      %v1182 = vld [vmem:[%s712 + $0x4] sm:$0xf]
      %v1183 = vld [vmem:[%s712 + $0x8] sm:$0xf]
      %v1184 = vld [vmem:[%s712 + $0xc] sm:$0xf]
      %v1185 = vpack.c.bf16 %v1180, %v1180
      %v1186 = vld [vmem:[%s715] sm:$0x1]
      %v1188 = vlaneseq
      %v1189 = vshrl.u32 %v1188, 7
      %v1190 = vsub.s32 0, %v1189
      %v1191 = vrot.slane %v1186, %v1190
      %v1197 = vunpack.c.l.b16 %v1181
      %v1198 = vunpack.c.l.b16 %v1182
      %v1199 = vunpack.c.l.b16 %v1183
      %v1200 = vunpack.c.l.b16 %v1184
      %v1201 = vpack.c.b16 %v1198, %v1197
      %v1202 = vpack.c.b16 %v1200, %v1199
      %v1206 = vsel %vm797, %v1185, 0
      %1208 = vmatprep.subr.bf16.mxu0 0
      %1209 = vmatpush1.bf16.msra.mxu0 0
      %1210 = vmatprep.subr.bf16.mxu0 0
      %1211 = vmatpush1.bf16.msra.mxu0 0
      %1212 = vmatprep.subr.bf16.mxu0 0
      %1213 = vmatpush1.bf16.msra.mxu0 0
      %1214 = vmatprep.subr.bf16.mxu0 0
      %1215 = vmatpush1.bf16.msra.mxu0 0
      %1216 = vmatprep.subr.bf16.mxu0 0
      %1217 = vmatpush1.bf16.msra.mxu0 0
      %1218 = vmatprep.subr.bf16.mxu0 0
      %1219 = vmatpush1.bf16.msra.mxu0 0
      %1220 = vmatprep.subr.bf16.mxu0 0
      %1221 = vmatpush1.bf16.msra.mxu0 %v1202
      %1222 = vmatprep.subr.bf16.mxu0 0
      %1223 = vmatpush1.bf16.msra.mxu0 %v1201
      %1224 = vmatprep.subr.bf16.mxu0 0
      %1225 = vmatpush2.bf16.msra.mxu0 0
      %1226 = vmatprep.subr.bf16.mxu0 0
      %1227 = vmatpush2.bf16.msra.mxu0 0
      %1228 = vmatprep.subr.bf16.mxu0 0
      %1229 = vmatpush2.bf16.msra.mxu0 0
      %1230 = vmatprep.subr.bf16.mxu0 0
      %1231 = vmatpush2.bf16.msra.mxu0 0
      %1232 = vmatprep.subr.bf16.mxu0 0
      %1233 = vmatpush2.bf16.msra.mxu0 0
      %1234 = vmatprep.subr.bf16.mxu0 0
      %1235 = vmatpush2.bf16.msra.mxu0 0
      %1236 = vmatprep.subr.bf16.mxu0 0
      %1237 = vmatpush2.bf16.msra.mxu0 0
      %1238 = vmatprep.subr.bf16.mxu0 0
      %1239 = vmatpush2.bf16.msra.mxu0 0
      %1240 = vmatprep.mubr.bf16.mxu0 0
      %1241 = vmatmul.mubr.bf16.gmra.mxu0 %v1206
      %v1242 = vpop.f32.mrf.mxu0
      %v1243 = vadd.f32 %v1191, %v1242
      %v1244 = vpop.f32.mrf.mxu0
      %v1245 = vpop.f32.mrf.mxu0
      %v1246 = vpop.f32.mrf.mxu0
      %1247 = vdwg.mxu0
      %v1248 = vmul.f32 %v1243, %v1243
      %v1249 = vmul.f32 %v1243, %v1248
      %v1250 = vmul.f32 %v1249, 0.044715
      %v1251 = vadd.f32 %v1243, %v1250
      %v1252 = vmul.f32 %v1251, 0.7978846
      %v1253 = vtanh.pop %v1252
      %v1254 = vadd.f32 %v1253, 1.0
      %v1255 = vmul.f32 %v1254, 0.5
      %v1256 = vmul.f32 %v1243, %v1255
      %v1257 = vld [vmem:[%s720] sm:$0xf]
      %v1258 = vld [vmem:[%s720 + $0x4] sm:$0xf]
      %v1259 = vld [vmem:[%s720 + $0x8] sm:$0xf]
      %v1260 = vld [vmem:[%s720 + $0xc] sm:$0xf]
      %v1261 = vld [vmem:[%s720 + $0x10] sm:$0xf]
      %v1262 = vld [vmem:[%s720 + $0x14] sm:$0xf]
      %v1263 = vld [vmem:[%s720 + $0x18] sm:$0xf]
      %v1264 = vld [vmem:[%s720 + $0x1c] sm:$0xf]
      %v1265 = vpack.c.bf16 %v1256, %v1256
      %v1266 = vld [vmem:[%s723] sm:$0x1]
      %v1268 = vlaneseq
      %v1269 = vshrl.u32 %v1268, 7
      %v1270 = vsub.s32 0, %v1269
      %v1271 = vrot.slane %v1266, %v1270
      %v1281 = vunpack.c.l.b16 %v1257
      %v1282 = vunpack.c.l.b16 %v1258
      %v1283 = vunpack.c.l.b16 %v1259
      %v1284 = vunpack.c.l.b16 %v1260
      %v1285 = vunpack.c.l.b16 %v1261
      %v1286 = vunpack.c.l.b16 %v1262
      %v1287 = vunpack.c.l.b16 %v1263
      %v1288 = vunpack.c.l.b16 %v1264
      %v1289 = vpack.c.b16 %v1282, %v1281
      %v1290 = vpack.c.b16 %v1284, %v1283
      %v1291 = vpack.c.b16 %v1286, %v1285
      %v1292 = vpack.c.b16 %v1288, %v1287
      %vm1297 = vcmask 523264
      %v1299 = vsel %vm1297, %v1265, 0
      %1301 = vmatprep.subr.bf16.mxu0 0
      %1302 = vmatpush1.bf16.msra.mxu0 0
      %1303 = vmatprep.subr.bf16.mxu0 0
      %1304 = vmatpush1.bf16.msra.mxu0 0
      %1305 = vmatprep.subr.bf16.mxu0 0
      %1306 = vmatpush1.bf16.msra.mxu0 0
      %1307 = vmatprep.subr.bf16.mxu0 0
      %1308 = vmatpush1.bf16.msra.mxu0 0
      %1309 = vmatprep.subr.bf16.mxu0 0
      %1310 = vmatpush1.bf16.msra.mxu0 %v1292
      %1311 = vmatprep.subr.bf16.mxu0 0
      %1312 = vmatpush1.bf16.msra.mxu0 %v1291
      %1313 = vmatprep.subr.bf16.mxu0 0
      %1314 = vmatpush1.bf16.msra.mxu0 %v1290
      %1315 = vmatprep.subr.bf16.mxu0 0
      %1316 = vmatpush1.bf16.msra.mxu0 %v1289
      %1317 = vmatprep.subr.bf16.mxu0 0
      %1318 = vmatpush2.bf16.msra.mxu0 0
      %1319 = vmatprep.subr.bf16.mxu0 0
      %1320 = vmatpush2.bf16.msra.mxu0 0
      %1321 = vmatprep.subr.bf16.mxu0 0
      %1322 = vmatpush2.bf16.msra.mxu0 0
      %1323 = vmatprep.subr.bf16.mxu0 0
      %1324 = vmatpush2.bf16.msra.mxu0 0
      %1325 = vmatprep.subr.bf16.mxu0 0
      %1326 = vmatpush2.bf16.msra.mxu0 0
      %1327 = vmatprep.subr.bf16.mxu0 0
      %1328 = vmatpush2.bf16.msra.mxu0 0
      %1329 = vmatprep.subr.bf16.mxu0 0
      %1330 = vmatpush2.bf16.msra.mxu0 0
      %1331 = vmatprep.subr.bf16.mxu0 0
      %1332 = vmatpush2.bf16.msra.mxu0 0
      %1333 = vmatprep.mubr.bf16.mxu0 0
      %1334 = vmatmul.mubr.bf16.gmra.mxu0 %v1299
      %v1335 = vpop.f32.mrf.mxu0
      %v1336 = vadd.f32 %v1271, %v1335
      %v1337 = vpop.f32.mrf.mxu0
      %v1338 = vpop.f32.mrf.mxu0
      %v1339 = vpop.f32.mrf.mxu0
      %1340 = vdwg.mxu0
      %v1341 = vadd.f32 %v1336, %v1180
      %v1342 = vld [vmem:[%s726] sm:$0x1]
      %v1343 = vld [vmem:[%s729] sm:$0x1]
      %v1344 = vsel %vm797, %v1341, 0.0
      %1345 = vadd.xlane.f32.xlu0 %v1344
      %v1346 = vpop.xlane.xlu0 %1345
      %v1347 = vmul.f32 %v1346, %v1156
      %v1348 = vsub.f32 %v1341, %v1347
      %v1349 = vmul.f32 %v1348, %v1348
      %v1350 = vsel %vm797, %v1349, 0.0
      %1351 = vadd.xlane.f32.xlu0 %v1350
      %v1352 = vpop.xlane.xlu0 %1351
      %v1353 = vmul.f32 %v1352, %v1156
      %v1354 = vadd.f32 %v1353, 1e-12
      %v1355 = vrsqrt.pop %v1354
      %v1356 = vmul.f32 %v1348, %v1355
      %v1358 = vlaneseq
      %v1359 = vshrl.u32 %v1358, 7
      %v1360 = vsub.s32 0, %v1359
      %v1361 = vrot.slane %v1342, %v1360
      %v1363 = vmul.f32 %v1356, %v1361
      %v1365 = vlaneseq
      %v1366 = vshrl.u32 %v1365, 7
      %v1367 = vsub.s32 0, %v1366
      %v1368 = vrot.slane %v1343, %v1367
      %v1370 = vadd.f32 %v1363, %v1368
      %1371 = vst.msk [vmem:[#allocation2] sm:$0xff] %vm797, %v1370
      %p1372 = scmp.eq.s32.totalorder %s32, 1
      // Predicated region
      $region89: #{emotion_classifier_forward.2} parent=83 // pred_check
        %p1373 = pneg %p1372
      $region90: #{emotion_classifier_forward.2} parent=83 // pred_check_branch
        %1375 = sbr.rel (%p1373) target = $region92
      $region91: #{emotion_classifier_forward.2} parent=83 // pred_region
        %vm1376 = vcmask 253952
        %1377 = vst.msk [vmem:[%s732] sm:$0x1] %vm1376, %v1370
      $region92: #{emotion_classifier_forward.2} parent=83 // pred_fallthru
        _
      %p1378 = scmp.lt.s32.totalorder %s31, 1
      %s1379 = scalar_select %p1378, %s31, 1
      %s1380 = scalar_lea.vmem %s16, %s1379
      // Predicated region
      $region93: #{emotion_classifier_forward.2} parent=83 // pred_check
        %p1381 = pneg %p463
      $region94: #{emotion_classifier_forward.2} parent=83 // pred_check_branch
        %1383 = sbr.rel (%p1381) target = $region96
      $region95: #{emotion_classifier_forward.2} parent=83 // pred_region
        _
      $region96: #{emotion_classifier_forward.2} parent=83 // pred_fallthru
        _
    $region84: #{emotion_classifier_forward.2} parent=5 // pred_fallthru
      _
    %p1384 = scmp.le.s32.totalorder 2, %s22
    // Predicated region
    $region97: #{emotion_classifier_forward.2} parent=5 // pred_check
      %p1385 = pneg %p1384
    $region98: #{emotion_classifier_forward.2} parent=5 // pred_check_branch
      %1387 = sbr.rel (%p1385) target = $region100
    $region99: #{emotion_classifier_forward.2} parent=5 // pred_region
      %s1388 = ssub.s32 %s22, 2
      // Predicated region
      $region101: #{emotion_classifier_forward.2} parent=99 // pred_check
        %p1389 = pneg %p469
      $region102: #{emotion_classifier_forward.2} parent=99 // pred_check_branch
        %1391 = sbr.rel (%p1389) target = $region104
      $region103: #{emotion_classifier_forward.2} parent=99 // pred_region
        %p1392 = scmp.lt.s32.totalorder %s33, 1
        %s1393 = scalar_select %p1392, %s33, 1
        %s1394 = scalar_lea.vmem %s16, %s1393
      $region104: #{emotion_classifier_forward.2} parent=99 // pred_fallthru
        _
    $region100: #{emotion_classifier_forward.2} parent=5 // pred_fallthru
      _
  $region6: #{emotion_classifier_forward.2} parent=0 // loop_footer
    %s26 = sadd.s32 1, %s22
  $region7: #{emotion_classifier_forward.2} parent=0 // loop_footer_branch
    %21 = sbr.rel target = $region3
  $region8: #{emotion_classifier_forward.2} parent=0 // loop_exit
    _

</llo_original>
